<compile_context>
chip_gen: v7x
topology: tpu7x:2x2x1
jax: 0.10.0
libtpu: 0.0.40
codegen_flags: <defaults>
</compile_context>

<pallas_src>
import numpy as np
import jax
import jax.numpy as jnp
from jax.experimental import pallas as pl
from jax.experimental.pallas import tpu as pltpu

ALPHA = 0.0               # module-level constant in the reference

DATA_SIZE = 1024          # 1x32x32 image flattened (.view(-1, 1024))
ENCODER_SZS = [256, 128]
LATENT_SIZE = 32
DECODER_SZS = ENCODER_SZS[::-1]   # [128, 256]

# bias-pack layout: name -> (row in the (8, 1024) slab, valid width)
_BIAS_ROWS = {
    "eb1":   (0, ENCODER_SZS[0]),
    "eb2":   (1, ENCODER_SZS[1]),
    "bhead": (2, 2 * LATENT_SIZE),
    "db1":   (3, DECODER_SZS[0]),
    "db2":   (4, DECODER_SZS[1]),
    "db3":   (5, DATA_SIZE),
}


def vae_kernel(d_ref, eps_ref, bias_ref,
               ew1_ref, ew2_ref, whead_ref,
               dw1_ref, dw2_ref, dw3_ref,
               px_ref, mu_ref, logvar_ref):
    """Whole VAE forward fused into one kernel (all operands resident in VMEM).

    Weights are bf16 (in, out); matmuls accumulate in f32 on the MXU.
    Both images run through the encoder as a single (2, 1024) batch and the
    mu/logvar heads are fused into one (128, 64) matmul.
    """

    def matmul(x, w_ref):
        return jnp.dot(x.astype(jnp.bfloat16), w_ref[...],
                       preferred_element_type=jnp.float32)

    def bias(name):
        row, width = _BIAS_ROWS[name]
        return bias_ref[row:row + 1, :width]          # (1, width) f32

    # --- encoder on both images at once: (2,1024) -> (2,256) -> (2,128) ---
    h = jnp.maximum(matmul(d_ref[...], ew1_ref) + bias("eb1"), 0.0)
    h = jnp.maximum(matmul(h, ew2_ref) + bias("eb2"), 0.0)

    # --- fused mu|logvar heads: (2,128) @ (128,64) -> (2,64) ---
    head = matmul(h, whead_ref) + bias("bhead")
    mu_a, lv_a = head[0:1, :LATENT_SIZE], head[0:1, LATENT_SIZE:]
    mu_b, lv_b = head[1:2, :LATENT_SIZE], head[1:2, LATENT_SIZE:]

    # --- reparameterize + interpolation ---
    # ALPHA == 0.0 at compile time, so z == z_a; the z_b/eps_b branch is
    # folded away entirely (and with it the 0*inf NaN hazard).
    z = mu_a + eps_ref[...] * jnp.exp(0.5 * lv_a)

    mu_ref[...] = 0.5 * (mu_a + mu_b)
    logvar_ref[...] = 0.5 * (lv_a + lv_b)

    # --- decoder: (1,32) -> 128 -> 256 -> 1024 -> sigmoid ---
    g = jnp.maximum(matmul(z, dw1_ref) + bias("db1"), 0.0)
    g = jnp.maximum(matmul(g, dw2_ref) + bias("db2"), 0.0)
    logits = matmul(g, dw3_ref) + bias("db3")
    # sigmoid: exp + approx reciprocal both go to the EUP slot (VALU stays free)
    px_ref[...] = pl.reciprocal(1.0 + jnp.exp(-logits), approx=True)


def vae_forward(x, d1, d2, eps_a, weights, bias_pack):
    """Mirror of VAE.forward(x): x is accepted and ignored (the reference
    encoder loads its two images from disk and never uses its argument)."""
    del x
    d = jnp.concatenate([d1, d2], axis=0)                  # (2, 1024)
    args = (d, eps_a, bias_pack) + tuple(weights)
    vmem = pl.BlockSpec(memory_space=pltpu.MemorySpace.VMEM)
    out_shape = (jax.ShapeDtypeStruct((1, DATA_SIZE), jnp.float32),
                 jax.ShapeDtypeStruct((1, LATENT_SIZE), jnp.float32),
                 jax.ShapeDtypeStruct((1, LATENT_SIZE), jnp.float32))
    return pl.pallas_call(
        vae_kernel,
        out_shape=out_shape,
        in_specs=[vmem] * len(args),
        out_specs=(vmem, vmem, vmem),
        compiler_params=pltpu.CompilerParams(vmem_limit_bytes=16 << 20),
    )(*args)


def init_linear(key, in_sz, out_sz):
    """Deterministic init mimicking torch.nn.Linear: U(-1/sqrt(in), 1/sqrt(in)).
    Weight is stored as (in, out) so the kernel does x @ W."""
    kw, kb = jax.random.split(key)
    bound = 1.0 / np.sqrt(in_sz)
    w = jax.random.uniform(kw, (in_sz, out_sz), jnp.float32, -bound, bound)
    b = jax.random.uniform(kb, (1, out_sz), jnp.float32, -bound, bound)
    return w, b


def make_params(key):
    keys = jax.random.split(key, 7)
    # encoder: 1024 -> 256 -> 128
    ew1, eb1 = init_linear(keys[0], DATA_SIZE, ENCODER_SZS[0])
    ew2, eb2 = init_linear(keys[1], ENCODER_SZS[0], ENCODER_SZS[1])
    wmu, bmu = init_linear(keys[2], ENCODER_SZS[1], LATENT_SIZE)
    wlv, blv = init_linear(keys[3], ENCODER_SZS[1], LATENT_SIZE)
    # decoder: 32 -> 128 -> 256 -> 1024
    dw1, db1 = init_linear(keys[4], LATENT_SIZE, DECODER_SZS[0])
    dw2, db2 = init_linear(keys[5], DECODER_SZS[0], DECODER_SZS[1])
    dw3, db3 = init_linear(keys[6], DECODER_SZS[1], DATA_SIZE)

    # fuse the mu / logvar heads along the output axis
    whead = jnp.concatenate([wmu, wlv], axis=1)            # (128, 64)
    bhead = jnp.concatenate([bmu, blv], axis=1)            # (1, 64)

    # bf16 weights (f32 accumulation in-kernel) -> half the HBM->VMEM bytes
    weights = tuple(w.astype(jnp.bfloat16)
                    for w in (ew1, ew2, whead, dw1, dw2, dw3))

    # pack the 6 biases into one (8, 1024) f32 slab -> one DMA, one tile
    bias_pack = jnp.zeros((8, DATA_SIZE), jnp.float32)
    for name, vec in (("eb1", eb1), ("eb2", eb2), ("bhead", bhead),
                      ("db1", db1), ("db2", db2), ("db3", db3)):
        row, width = _BIAS_ROWS[name]
        bias_pack = bias_pack.at[row, :width].set(vec[0])
    return weights, bias_pack


def vae_reference(d1, d2, eps_a, weights, bias_pack):
    """Pure-JAX reference with identical numerics (bf16 matmul inputs,
    f32 accumulation) for verification."""
    ew1, ew2, whead, dw1, dw2, dw3 = weights

    def bias(name):
        row, width = _BIAS_ROWS[name]
        return bias_pack[row:row + 1, :width]

    def mm(x, w):
        return jnp.dot(x.astype(jnp.bfloat16), w,
                       preferred_element_type=jnp.float32)

    d = jnp.concatenate([d1, d2], axis=0)
    h = jax.nn.relu(mm(d, ew1) + bias("eb1"))
    h = jax.nn.relu(mm(h, ew2) + bias("eb2"))
    head = mm(h, whead) + bias("bhead")
    mu_a, lv_a = head[0:1, :LATENT_SIZE], head[0:1, LATENT_SIZE:]
    mu_b, lv_b = head[1:2, :LATENT_SIZE], head[1:2, LATENT_SIZE:]
    z = mu_a + eps_a * jnp.exp(0.5 * lv_a)     # ALPHA == 0.0 -> z == z_a
    g = jax.nn.relu(mm(z, dw1) + bias("db1"))
    g = jax.nn.relu(mm(g, dw2) + bias("db2"))
    px = jax.nn.sigmoid(mm(g, dw3) + bias("db3"))
    return px, 0.5 * (mu_a + mu_b), 0.5 * (lv_a + lv_b)


if __name__ == "__main__":
    key = jax.random.PRNGKey(0)
    k_x, k_d1, k_d2, k_ea, k_par = jax.random.split(key, 5)

    # one image per forward, as in the reference (.view(-1, 1024))
    x = jax.random.uniform(k_x, (1, DATA_SIZE), jnp.float32)     # ignored
    d1 = jax.random.uniform(k_d1, (1, DATA_SIZE), jnp.float32)   # "2898.png"
    d2 = jax.random.uniform(k_d2, (1, DATA_SIZE), jnp.float32)   # "2904.png"
    eps_a = jax.random.normal(k_ea, (1, LATENT_SIZE), jnp.float32)

    weights, bias_pack = make_params(k_par)

    p_x, mu, logvar = vae_forward(x, d1, d2, eps_a, weights, bias_pack)
    jax.block_until_ready((p_x, mu, logvar))

    # verify against the numerics-matched pure-JAX reference
    p_x_r, mu_r, lv_r = vae_reference(d1, d2, eps_a, weights, bias_pack)
    np.testing.assert_allclose(np.asarray(mu), np.asarray(mu_r),
                               rtol=1e-4, atol=1e-4)
    np.testing.assert_allclose(np.asarray(logvar), np.asarray(lv_r),
                               rtol=1e-4, atol=1e-4)
    # p_x uses an approx-reciprocal sigmoid in-kernel; outputs are in [0, 1]
    np.testing.assert_allclose(np.asarray(p_x), np.asarray(p_x_r),
                               rtol=1e-2, atol=1e-2)

    assert p_x.shape == (1, DATA_SIZE)
    assert mu.shape == (1, LATENT_SIZE)
    assert logvar.shape == (1, LATENT_SIZE)

    print("KERNEL_OK")
</pallas_src>

<mosaic_0001>
module attributes {stable_mosaic.version = 11 : i64} {
  func.func @vae_kernel(%arg0: memref<2x1024xf32, #tpu.memory_space<vmem>>, %arg1: memref<1x32xf32, #tpu.memory_space<vmem>>, %arg2: memref<8x1024xf32, #tpu.memory_space<vmem>>, %arg3: memref<1024x256xbf16, #tpu.memory_space<vmem>>, %arg4: memref<256x128xbf16, #tpu.memory_space<vmem>>, %arg5: memref<128x64xbf16, #tpu.memory_space<vmem>>, %arg6: memref<32x128xbf16, #tpu.memory_space<vmem>>, %arg7: memref<128x256xbf16, #tpu.memory_space<vmem>>, %arg8: memref<256x1024xbf16, #tpu.memory_space<vmem>>, %arg9: memref<1x1024xf32, #tpu.memory_space<vmem>>, %arg10: memref<1x32xf32, #tpu.memory_space<vmem>>, %arg11: memref<1x32xf32, #tpu.memory_space<vmem>>) attributes {dimension_semantics = [], scalar_prefetch = 0 : i64, scratch_operands = 0 : i64, tpu.core_type = #tpu.core_type<tc>} {
    %c0 = arith.constant 0 : index
    %c0_0 = arith.constant 0 : index
    %0 = vector.load %arg0[%c0, %c0_0] : memref<2x1024xf32, #tpu.memory_space<vmem>>, vector<2x1024xf32>
    %1 = arith.truncf %0 : vector<2x1024xf32> to vector<2x1024xbf16>
    %c0_1 = arith.constant 0 : index
    %c0_2 = arith.constant 0 : index
    %2 = vector.load %arg3[%c0_1, %c0_2] : memref<1024x256xbf16, #tpu.memory_space<vmem>>, vector<1024x256xbf16>
    %cst = arith.constant dense<0.000000e+00> : vector<2x256xf32>
    %3 = tpu.matmul %1, %2, %cst {dimension_numbers = #tpu.dot_dimension_numbers<[1], [0], [0], [1], [0, 0, 1, 1], [], []>} : vector<2x1024xbf16>, vector<1024x256xbf16>, vector<2x256xf32> -> vector<2x256xf32>
    %c0_3 = arith.constant 0 : index
    %c0_4 = arith.constant 0 : index
    %4 = vector.load %arg2[%c0_3, %c0_4] : memref<8x1024xf32, #tpu.memory_space<vmem>>, vector<1x256xf32>
    %5 = vector.broadcast %4 : vector<1x256xf32> to vector<2x256xf32>
    %6 = arith.addf %3, %5 : vector<2x256xf32>
    %cst_5 = arith.constant 0.000000e+00 : f32
    %7 = vector.broadcast %cst_5 : f32 to vector<2x256xf32>
    %8 = arith.maximumf %6, %7 : vector<2x256xf32>
    %9 = arith.truncf %8 : vector<2x256xf32> to vector<2x256xbf16>
    %c0_6 = arith.constant 0 : index
    %c0_7 = arith.constant 0 : index
    %10 = vector.load %arg4[%c0_6, %c0_7] : memref<256x128xbf16, #tpu.memory_space<vmem>>, vector<256x128xbf16>
    %cst_8 = arith.constant dense<0.000000e+00> : vector<2x128xf32>
    %11 = tpu.matmul %9, %10, %cst_8 {dimension_numbers = #tpu.dot_dimension_numbers<[1], [0], [0], [1], [0, 0, 1, 1], [], []>} : vector<2x256xbf16>, vector<256x128xbf16>, vector<2x128xf32> -> vector<2x128xf32>
    %c1 = arith.constant 1 : index
    %c0_9 = arith.constant 0 : index
    %12 = vector.load %arg2[%c1, %c0_9] : memref<8x1024xf32, #tpu.memory_space<vmem>>, vector<1x128xf32>
    %13 = vector.broadcast %12 : vector<1x128xf32> to vector<2x128xf32>
    %14 = arith.addf %11, %13 : vector<2x128xf32>
    %cst_10 = arith.constant 0.000000e+00 : f32
    %15 = vector.broadcast %cst_10 : f32 to vector<2x128xf32>
    %16 = arith.maximumf %14, %15 : vector<2x128xf32>
    %17 = arith.truncf %16 : vector<2x128xf32> to vector<2x128xbf16>
    %c0_11 = arith.constant 0 : index
    %c0_12 = arith.constant 0 : index
    %18 = vector.load %arg5[%c0_11, %c0_12] : memref<128x64xbf16, #tpu.memory_space<vmem>>, vector<128x64xbf16>
    %cst_13 = arith.constant dense<0.000000e+00> : vector<2x64xf32>
    %19 = tpu.matmul %17, %18, %cst_13 {dimension_numbers = #tpu.dot_dimension_numbers<[1], [0], [0], [1], [0, 0, 1, 1], [], []>} : vector<2x128xbf16>, vector<128x64xbf16>, vector<2x64xf32> -> vector<2x64xf32>
    %c2 = arith.constant 2 : index
    %c0_14 = arith.constant 0 : index
    %20 = vector.load %arg2[%c2, %c0_14] : memref<8x1024xf32, #tpu.memory_space<vmem>>, vector<1x64xf32>
    %21 = vector.broadcast %20 : vector<1x64xf32> to vector<2x64xf32>
    %22 = arith.addf %19, %21 : vector<2x64xf32>
    %23 = vector.extract_strided_slice %22 {offsets = [0, 0], sizes = [1, 32], strides = [1, 1]} : vector<2x64xf32> to vector<1x32xf32>
    %24 = vector.extract_strided_slice %22 {offsets = [0, 32], sizes = [1, 32], strides = [1, 1]} : vector<2x64xf32> to vector<1x32xf32>
    %25 = vector.extract_strided_slice %22 {offsets = [1, 0], sizes = [1, 32], strides = [1, 1]} : vector<2x64xf32> to vector<1x32xf32>
    %26 = vector.extract_strided_slice %22 {offsets = [1, 32], sizes = [1, 32], strides = [1, 1]} : vector<2x64xf32> to vector<1x32xf32>
    %c0_15 = arith.constant 0 : index
    %c0_16 = arith.constant 0 : index
    %27 = vector.load %arg1[%c0_15, %c0_16] : memref<1x32xf32, #tpu.memory_space<vmem>>, vector<1x32xf32>
    %cst_17 = arith.constant 5.000000e-01 : f32
    %28 = vector.broadcast %cst_17 : f32 to vector<1x32xf32>
    %29 = arith.mulf %28, %24 : vector<1x32xf32>
    %30 = math.exp %29 : vector<1x32xf32>
    %31 = arith.mulf %27, %30 : vector<1x32xf32>
    %32 = arith.addf %23, %31 : vector<1x32xf32>
    %33 = arith.addf %23, %25 : vector<1x32xf32>
    %cst_18 = arith.constant 5.000000e-01 : f32
    %34 = vector.broadcast %cst_18 : f32 to vector<1x32xf32>
    %35 = arith.mulf %34, %33 : vector<1x32xf32>
    %c0_19 = arith.constant 0 : index
    %c0_20 = arith.constant 0 : index
    %36 = vector.load %arg10[%c0_19, %c0_20] : memref<1x32xf32, #tpu.memory_space<vmem>>, vector<1x32xf32>
    tpu.vector_store %arg10[%c0_19, %c0_20], %35 {strides = array<i32>} : memref<1x32xf32, #tpu.memory_space<vmem>>, vector<1x32xf32>,
    %37 = arith.addf %24, %26 : vector<1x32xf32>
    %cst_21 = arith.constant 5.000000e-01 : f32
    %38 = vector.broadcast %cst_21 : f32 to vector<1x32xf32>
    %39 = arith.mulf %38, %37 : vector<1x32xf32>
    %c0_22 = arith.constant 0 : index
    %c0_23 = arith.constant 0 : index
    %40 = vector.load %arg11[%c0_22, %c0_23] : memref<1x32xf32, #tpu.memory_space<vmem>>, vector<1x32xf32>
    tpu.vector_store %arg11[%c0_22, %c0_23], %39 {strides = array<i32>} : memref<1x32xf32, #tpu.memory_space<vmem>>, vector<1x32xf32>,
    %41 = arith.truncf %32 : vector<1x32xf32> to vector<1x32xbf16>
    %c0_24 = arith.constant 0 : index
    %c0_25 = arith.constant 0 : index
    %42 = vector.load %arg6[%c0_24, %c0_25] : memref<32x128xbf16, #tpu.memory_space<vmem>>, vector<32x128xbf16>
    %cst_26 = arith.constant dense<0.000000e+00> : vector<1x128xf32>
    %43 = tpu.matmul %41, %42, %cst_26 {dimension_numbers = #tpu.dot_dimension_numbers<[1], [0], [0], [1], [0, 0, 1, 1], [], []>} : vector<1x32xbf16>, vector<32x128xbf16>, vector<1x128xf32> -> vector<1x128xf32>
    %c3 = arith.constant 3 : index
    %c0_27 = arith.constant 0 : index
    %44 = vector.load %arg2[%c3, %c0_27] : memref<8x1024xf32, #tpu.memory_space<vmem>>, vector<1x128xf32>
    %45 = arith.addf %43, %44 : vector<1x128xf32>
    %cst_28 = arith.constant 0.000000e+00 : f32
    %46 = vector.broadcast %cst_28 : f32 to vector<1x128xf32>
    %47 = arith.maximumf %45, %46 : vector<1x128xf32>
    %48 = arith.truncf %47 : vector<1x128xf32> to vector<1x128xbf16>
    %c0_29 = arith.constant 0 : index
    %c0_30 = arith.constant 0 : index
    %49 = vector.load %arg7[%c0_29, %c0_30] : memref<128x256xbf16, #tpu.memory_space<vmem>>, vector<128x256xbf16>
    %cst_31 = arith.constant dense<0.000000e+00> : vector<1x256xf32>
    %50 = tpu.matmul %48, %49, %cst_31 {dimension_numbers = #tpu.dot_dimension_numbers<[1], [0], [0], [1], [0, 0, 1, 1], [], []>} : vector<1x128xbf16>, vector<128x256xbf16>, vector<1x256xf32> -> vector<1x256xf32>
    %c4 = arith.constant 4 : index
    %c0_32 = arith.constant 0 : index
    %51 = vector.load %arg2[%c4, %c0_32] : memref<8x1024xf32, #tpu.memory_space<vmem>>, vector<1x256xf32>
    %52 = arith.addf %50, %51 : vector<1x256xf32>
    %cst_33 = arith.constant 0.000000e+00 : f32
    %53 = vector.broadcast %cst_33 : f32 to vector<1x256xf32>
    %54 = arith.maximumf %52, %53 : vector<1x256xf32>
    %55 = arith.truncf %54 : vector<1x256xf32> to vector<1x256xbf16>
    %c0_34 = arith.constant 0 : index
    %c0_35 = arith.constant 0 : index
    %56 = vector.load %arg8[%c0_34, %c0_35] : memref<256x1024xbf16, #tpu.memory_space<vmem>>, vector<256x1024xbf16>
    %cst_36 = arith.constant dense<0.000000e+00> : vector<1x1024xf32>
    %57 = tpu.matmul %55, %56, %cst_36 {dimension_numbers = #tpu.dot_dimension_numbers<[1], [0], [0], [1], [0, 0, 1, 1], [], []>} : vector<1x256xbf16>, vector<256x1024xbf16>, vector<1x1024xf32> -> vector<1x1024xf32>
    %c5 = arith.constant 5 : index
    %c0_37 = arith.constant 0 : index
    %58 = vector.load %arg2[%c5, %c0_37] : memref<8x1024xf32, #tpu.memory_space<vmem>>, vector<1x1024xf32>
    %59 = arith.addf %57, %58 : vector<1x1024xf32>
    %cst_38 = arith.constant 0.000000e+00 : f32
    %60 = vector.broadcast %cst_38 : f32 to vector<1x1024xf32>
    %61 = arith.subf %60, %59 : vector<1x1024xf32>
    %62 = math.exp %61 : vector<1x1024xf32>
    %cst_39 = arith.constant 1.000000e+00 : f32
    %63 = vector.broadcast %cst_39 : f32 to vector<1x1024xf32>
    %64 = arith.addf %63, %62 : vector<1x1024xf32>
    %65 = tpu.reciprocal %64 {approx = true} : vector<1x1024xf32> -> vector<1x1024xf32>
    %c0_40 = arith.constant 0 : index
    %c0_41 = arith.constant 0 : index
    %66 = vector.load %arg9[%c0_40, %c0_41] : memref<1x1024xf32, #tpu.memory_space<vmem>>, vector<1x1024xf32>
    tpu.vector_store %arg9[%c0_40, %c0_41], %65 {strides = array<i32>} : memref<1x1024xf32, #tpu.memory_space<vmem>>, vector<1x1024xf32>,
    return
  }
}

</mosaic_0001>

<llo_original>
// kernel: tpu_custom_call.1
$region0: #{tpu_custom_call.1}
  #allocation0 [shape = 'u32[]', space=smem, size = 0x4, offset = 0x4, fixed_abs, tag = 'smem constant byte address 0x4 - core index']
  #allocation1 [shape = 'u32[144,128]{1,0:T(1,128)}', space=vmem, size = 0x12000, scoped, tag = 'internal scratch']
  %s0 = inlined_call_operand.vmem [shape: f32[2,1024], index: 0, kind: input, shape index: {}]
  %s1 = inlined_call_operand.vmem [shape: f32[1,32], index: 1, kind: input, shape index: {}]
  %s2 = inlined_call_operand.vmem [shape: f32[8,1024], index: 2, kind: input, shape index: {}]
  %s3 = inlined_call_operand.hbm [shape: bf16[1024,256], index: 3, kind: input, shape index: {}]
  %s4 = inlined_call_operand.hbm [shape: bf16[256,128], index: 4, kind: input, shape index: {}]
  %s5 = inlined_call_operand.vmem [shape: bf16[128,64], index: 5, kind: input, shape index: {}]
  %s6 = inlined_call_operand.vmem [shape: bf16[32,128], index: 6, kind: input, shape index: {}]
  %s7 = inlined_call_operand.hbm [shape: bf16[128,256], index: 7, kind: input, shape index: {}]
  %s8 = inlined_call_operand.hbm [shape: bf16[256,1024], index: 8, kind: input, shape index: {}]
  %s9 = inlined_call_operand.hbm [shape: f32[1,1024], index: 9, kind: output, shape index: {0}]
  %s10 = inlined_call_operand.hbm [shape: f32[1,32], index: 10, kind: output, shape index: {1}]
  %s11 = inlined_call_operand.hbm [shape: f32[1,32], index: 11, kind: output, shape index: {2}]
  %12 = xla_tuple %s9, %s10, %s11
  %s13 = sld [smem:[#allocation0]]
  $region78: #{tpu_custom_call.1} parent=0
    _
  %s15 = ssub.s32 1, %s13
  %s16 = scalar_select 0, %s15, %s13
  $region1: #{tpu_custom_call.1} parent=0
    #allocation2 [shape = 'u8[524288]{0}', space=vmem, size = 0x80000, scoped, tag = 'input window, operand 3, single buffered']
    #allocation3 [shape = 's32[1]{0}', space=sflag, size = 0x4, scoped, tag = 'scoped memory for tpu_custom_call.1']
    #allocation4 [shape = 's32[1]{0}', space=sflag, size = 0x4, scoped, tag = 'scoped memory for tpu_custom_call.1']
    #allocation5 [shape = 'u8[65536]{0}', space=vmem, size = 0x10000, scoped, tag = 'input window, operand 4, single buffered']
    #allocation6 [shape = 's32[1]{0}', space=sflag, size = 0x4, scoped, tag = 'scoped memory for tpu_custom_call.1']
    #allocation7 [shape = 'u8[65536]{0}', space=vmem, size = 0x10000, scoped, tag = 'input window, operand 7, single buffered']
    #allocation8 [shape = 'u8[524288]{0}', space=vmem, size = 0x80000, scoped, tag = 'input window, operand 8, single buffered']
    #allocation9 [shape = 's32[1]{0}', space=sflag, size = 0x4, scoped, tag = 'scoped memory for tpu_custom_call.1']
    #allocation10 [shape = 'u8[4096]{0}', space=vmem, size = 0x1000, scoped, tag = 'output window, operand 0, single buffered']
    #allocation11 [shape = 'u8[512]{0}', space=vmem, size = 0x400, scoped, tag = 'output window, operand 1, single buffered']
    #allocation12 [shape = 's32[1]{0}', space=sflag, size = 0x4, scoped, tag = 'scoped memory for tpu_custom_call.1']
    #allocation13 [shape = 'u8[512]{0}', space=vmem, size = 0x400, scoped, tag = 'output window, operand 2, single buffered']
    %17 = vsyncpa [#allocation3], 0
    %18 = vsyncpa [#allocation6], 0
    %19 = vsyncpa [#allocation9], 0
    %20 = vsyncpa [#allocation4], 0
    %21 = vsyncpa [#allocation12], 0
    // Predicated region
    $region2: #{tpu_custom_call.1} parent=1 // pred_check
      _
    $region3: #{tpu_custom_call.1} parent=1 // pred_check_branch
      %23 = sbr.rel (0) target = $region5
    $region4: #{tpu_custom_call.1} parent=1 // pred_region
      _
    $region5: #{tpu_custom_call.1} parent=1 // pred_fallthru
      _
    // Predicated region
    $region6: #{tpu_custom_call.1} parent=1 // pred_check
      _
    $region7: #{tpu_custom_call.1} parent=1 // pred_check_branch
      %25 = sbr.rel (0) target = $region9
    $region8: #{tpu_custom_call.1} parent=1 // pred_region
      _
    $region9: #{tpu_custom_call.1} parent=1 // pred_fallthru
      _
    // Predicated region
    $region10: #{tpu_custom_call.1} parent=1 // pred_check
      _
    $region11: #{tpu_custom_call.1} parent=1 // pred_check_branch
      %27 = sbr.rel (0) target = $region13
    $region12: #{tpu_custom_call.1} parent=1 // pred_region
      _
    $region13: #{tpu_custom_call.1} parent=1 // pred_fallthru
      _
    // Predicated region
    $region14: #{tpu_custom_call.1} parent=1 // pred_check
      _
    $region15: #{tpu_custom_call.1} parent=1 // pred_check_branch
      %29 = sbr.rel (0) target = $region17
    $region16: #{tpu_custom_call.1} parent=1 // pred_region
      %s31 = ssub.s32 16384, 16384
      %32 = vsyncadd [#allocation3], %s31
      %s33 = sshll.u32 [#allocation2], 4
      %s34 = int_to_ptr.vmem [resolvable:$true] %s33
      %39 = dma.hbm_to_vmem [thread:$0]  %s3, 16384, %s34, [#allocation3], 128, 128, 8
    $region17: #{tpu_custom_call.1} parent=1 // pred_fallthru
      _
    // Predicated region
    $region18: #{tpu_custom_call.1} parent=1 // pred_check
      _
    $region19: #{tpu_custom_call.1} parent=1 // pred_check_branch
      %41 = sbr.rel (0) target = $region21
    $region20: #{tpu_custom_call.1} parent=1 // pred_region
      %s43 = ssub.s32 2048, 2048
      %44 = vsyncadd [#allocation6], %s43
      %s45 = sshll.u32 [#allocation5], 4
      %s46 = int_to_ptr.vmem [resolvable:$true] %s45
      %51 = dma.hbm_to_vmem [thread:$0]  %s4, 2048, %s46, [#allocation6], 64, 64, 4
    $region21: #{tpu_custom_call.1} parent=1 // pred_fallthru
      _
    // Predicated region
    $region22: #{tpu_custom_call.1} parent=1 // pred_check
      _
    $region23: #{tpu_custom_call.1} parent=1 // pred_check_branch
      %53 = sbr.rel (0) target = $region25
    $region24: #{tpu_custom_call.1} parent=1 // pred_region
      _
    $region25: #{tpu_custom_call.1} parent=1 // pred_fallthru
      _
    // Predicated region
    $region26: #{tpu_custom_call.1} parent=1 // pred_check
      _
    $region27: #{tpu_custom_call.1} parent=1 // pred_check_branch
      %55 = sbr.rel (0) target = $region29
    $region28: #{tpu_custom_call.1} parent=1 // pred_region
      _
    $region29: #{tpu_custom_call.1} parent=1 // pred_fallthru
      _
    // Predicated region
    $region30: #{tpu_custom_call.1} parent=1 // pred_check
      _
    $region31: #{tpu_custom_call.1} parent=1 // pred_check_branch
      %57 = sbr.rel (0) target = $region33
    $region32: #{tpu_custom_call.1} parent=1 // pred_region
      %s59 = ssub.s32 2048, 2048
      %60 = vsyncadd [#allocation6], %s59
      %s61 = sshll.u32 [#allocation7], 4
      %s62 = int_to_ptr.vmem [resolvable:$true] %s61
      %67 = dma.hbm_to_vmem [thread:$0]  %s7, 2048, %s62, [#allocation6], 128, 128, 8
    $region33: #{tpu_custom_call.1} parent=1 // pred_fallthru
      _
    // Predicated region
    $region34: #{tpu_custom_call.1} parent=1 // pred_check
      _
    $region35: #{tpu_custom_call.1} parent=1 // pred_check_branch
      %69 = sbr.rel (0) target = $region37
    $region36: #{tpu_custom_call.1} parent=1 // pred_region
      %s71 = ssub.s32 16384, 16384
      %72 = vsyncadd [#allocation9], %s71
      %s73 = sshll.u32 [#allocation8], 4
      %s74 = int_to_ptr.vmem [resolvable:$true] %s73
      %79 = dma.hbm_to_vmem [thread:$0]  %s8, 16384, %s74, [#allocation9], 512, 512, 32
    $region37: #{tpu_custom_call.1} parent=1 // pred_fallthru
      _
    // Predicated region
    $region38: #{tpu_custom_call.1} parent=1 // pred_check
      _
    $region39: #{tpu_custom_call.1} parent=1 // pred_check_branch
      %81 = sbr.rel (0) target = $region41
    $region40: #{tpu_custom_call.1} parent=1 // pred_region
      %82 = dma.done [#allocation3], 16384
    $region41: #{tpu_custom_call.1} parent=1 // pred_fallthru
      _
    // Predicated region
    $region42: #{tpu_custom_call.1} parent=1 // pred_check
      _
    $region43: #{tpu_custom_call.1} parent=1 // pred_check_branch
      %84 = sbr.rel (0) target = $region45
    $region44: #{tpu_custom_call.1} parent=1 // pred_region
      %85 = dma.done [#allocation6], 2048
    $region45: #{tpu_custom_call.1} parent=1 // pred_fallthru
      _
    // Predicated region
    $region46: #{tpu_custom_call.1} parent=1 // pred_check
      _
    $region47: #{tpu_custom_call.1} parent=1 // pred_check_branch
      %87 = sbr.rel (0) target = $region49
    $region48: #{tpu_custom_call.1} parent=1 // pred_region
      %88 = dma.done [#allocation6], 2048
    $region49: #{tpu_custom_call.1} parent=1 // pred_fallthru
      _
    // Predicated region
    $region50: #{tpu_custom_call.1} parent=1 // pred_check
      _
    $region51: #{tpu_custom_call.1} parent=1 // pred_check_branch
      %90 = sbr.rel (0) target = $region53
    $region52: #{tpu_custom_call.1} parent=1 // pred_region
      %91 = dma.done [#allocation9], 16384
    $region53: #{tpu_custom_call.1} parent=1 // pred_fallthru
      _
    %v93 = vld [vmem:[%s0] sm:$0xff]
    %v94 = vld [vmem:[%s0 + $0x8] sm:$0xff]
    %v97 = vcombine.high %v93, %v93
    %v99 = vunpack.c.l.s4 1983009808
    %v100 = vunpack.c.0.s8 %v99
    %v101 = vlaneseq
    %v102 = vshrl.u32 %v101, 7
    %v103 = vsub.s32 %v100, %v102
    %v104 = vrot.slane %v93, %v103
    %v106 = vunpack.c.l.s4 1983009808
    %v107 = vunpack.c.0.s8 %v106
    %v108 = vlaneseq
    %v109 = vshrl.u32 %v108, 7
    %v110 = vsub.s32 %v107, %v109
    %v111 = vrot.slane %v97, %v110
    %v112 = vcombine.high %v104, %v104
    %v113 = vcombine.high %v111, %v111
    %v114 = vcombine.high %v94, %v94
    %v116 = vunpack.c.l.s4 1983009808
    %v117 = vunpack.c.0.s8 %v116
    %v118 = vlaneseq
    %v119 = vshrl.u32 %v118, 7
    %v120 = vsub.s32 %v117, %v119
    %v121 = vrot.slane %v94, %v120
    %v123 = vunpack.c.l.s4 1983009808
    %v124 = vunpack.c.0.s8 %v123
    %v125 = vlaneseq
    %v126 = vshrl.u32 %v125, 7
    %v127 = vsub.s32 %v124, %v126
    %v128 = vrot.slane %v114, %v127
    %v129 = vcombine.high %v121, %v121
    %v130 = vcombine.high %v128, %v128
    %v139 = vpack.c.bf16 %v104, %v104
    %v140 = vpack.c.bf16 %v112, %v112
    %v141 = vpack.c.bf16 %v111, %v111
    %v142 = vpack.c.bf16 %v113, %v113
    %v143 = vpack.c.bf16 %v121, %v121
    %v144 = vpack.c.bf16 %v129, %v129
    %v145 = vpack.c.bf16 %v128, %v128
    %v146 = vpack.c.bf16 %v130, %v130
    %v147 = vld [vmem:[#allocation2] sm:$0xff]
    %v148 = vld [vmem:[#allocation2 + $0x8] sm:$0xff]
    %v149 = vld [vmem:[#allocation2 + $0x10] sm:$0xff]
    %v150 = vld [vmem:[#allocation2 + $0x18] sm:$0xff]
    %v151 = vld [vmem:[#allocation2 + $0x20] sm:$0xff]
    %v152 = vld [vmem:[#allocation2 + $0x28] sm:$0xff]
    %v153 = vld [vmem:[#allocation2 + $0x30] sm:$0xff]
    %v154 = vld [vmem:[#allocation2 + $0x38] sm:$0xff]
    %v155 = vld [vmem:[#allocation2 + $0x40] sm:$0xff]
    %v156 = vld [vmem:[#allocation2 + $0x48] sm:$0xff]
    %v157 = vld [vmem:[#allocation2 + $0x50] sm:$0xff]
    %v158 = vld [vmem:[#allocation2 + $0x58] sm:$0xff]
    %v159 = vld [vmem:[#allocation2 + $0x60] sm:$0xff]
    %v160 = vld [vmem:[#allocation2 + $0x68] sm:$0xff]
    %v161 = vld [vmem:[#allocation2 + $0x70] sm:$0xff]
    %v162 = vld [vmem:[#allocation2 + $0x78] sm:$0xff]
    %v163 = vld [vmem:[#allocation2 + $0x80] sm:$0xff]
    %v164 = vld [vmem:[#allocation2 + $0x88] sm:$0xff]
    %v165 = vld [vmem:[#allocation2 + $0x90] sm:$0xff]
    %v166 = vld [vmem:[#allocation2 + $0x98] sm:$0xff]
    %v167 = vld [vmem:[#allocation2 + $0xa0] sm:$0xff]
    %v168 = vld [vmem:[#allocation2 + $0xa8] sm:$0xff]
    %v169 = vld [vmem:[#allocation2 + $0xb0] sm:$0xff]
    %v170 = vld [vmem:[#allocation2 + $0xb8] sm:$0xff]
    %v171 = vld [vmem:[#allocation2 + $0xc0] sm:$0xff]
    %v172 = vld [vmem:[#allocation2 + $0xc8] sm:$0xff]
    %v173 = vld [vmem:[#allocation2 + $0xd0] sm:$0xff]
    %v174 = vld [vmem:[#allocation2 + $0xd8] sm:$0xff]
    %v175 = vld [vmem:[#allocation2 + $0xe0] sm:$0xff]
    %v176 = vld [vmem:[#allocation2 + $0xe8] sm:$0xff]
    %v177 = vld [vmem:[#allocation2 + $0xf0] sm:$0xff]
    %v178 = vld [vmem:[#allocation2 + $0xf8] sm:$0xff]
    %v179 = vld [vmem:[#allocation2 + $0x100] sm:$0xff]
    %v180 = vld [vmem:[#allocation2 + $0x108] sm:$0xff]
    %v181 = vld [vmem:[#allocation2 + $0x110] sm:$0xff]
    %v182 = vld [vmem:[#allocation2 + $0x118] sm:$0xff]
    %v183 = vld [vmem:[#allocation2 + $0x120] sm:$0xff]
    %v184 = vld [vmem:[#allocation2 + $0x128] sm:$0xff]
    %v185 = vld [vmem:[#allocation2 + $0x130] sm:$0xff]
    %v186 = vld [vmem:[#allocation2 + $0x138] sm:$0xff]
    %v187 = vld [vmem:[#allocation2 + $0x140] sm:$0xff]
    %v188 = vld [vmem:[#allocation2 + $0x148] sm:$0xff]
    %v189 = vld [vmem:[#allocation2 + $0x150] sm:$0xff]
    %v190 = vld [vmem:[#allocation2 + $0x158] sm:$0xff]
    %v191 = vld [vmem:[#allocation2 + $0x160] sm:$0xff]
    %v192 = vld [vmem:[#allocation2 + $0x168] sm:$0xff]
    %v193 = vld [vmem:[#allocation2 + $0x170] sm:$0xff]
    %v194 = vld [vmem:[#allocation2 + $0x178] sm:$0xff]
    %v195 = vld [vmem:[#allocation2 + $0x180] sm:$0xff]
    %v196 = vld [vmem:[#allocation2 + $0x188] sm:$0xff]
    %v197 = vld [vmem:[#allocation2 + $0x190] sm:$0xff]
    %v198 = vld [vmem:[#allocation2 + $0x198] sm:$0xff]
    %v199 = vld [vmem:[#allocation2 + $0x1a0] sm:$0xff]
    %v200 = vld [vmem:[#allocation2 + $0x1a8] sm:$0xff]
    %v201 = vld [vmem:[#allocation2 + $0x1b0] sm:$0xff]
    %v202 = vld [vmem:[#allocation2 + $0x1b8] sm:$0xff]
    %v203 = vld [vmem:[#allocation2 + $0x1c0] sm:$0xff]
    %v204 = vld [vmem:[#allocation2 + $0x1c8] sm:$0xff]
    %v205 = vld [vmem:[#allocation2 + $0x1d0] sm:$0xff]
    %v206 = vld [vmem:[#allocation2 + $0x1d8] sm:$0xff]
    %v207 = vld [vmem:[#allocation2 + $0x1e0] sm:$0xff]
    %v208 = vld [vmem:[#allocation2 + $0x1e8] sm:$0xff]
    %v209 = vld [vmem:[#allocation2 + $0x1f0] sm:$0xff]
    %v210 = vld [vmem:[#allocation2 + $0x1f8] sm:$0xff]
    %v211 = vld [vmem:[#allocation2 + $0x200] sm:$0xff]
    %v212 = vld [vmem:[#allocation2 + $0x208] sm:$0xff]
    %v213 = vld [vmem:[#allocation2 + $0x210] sm:$0xff]
    %v214 = vld [vmem:[#allocation2 + $0x218] sm:$0xff]
    %v215 = vld [vmem:[#allocation2 + $0x220] sm:$0xff]
    %v216 = vld [vmem:[#allocation2 + $0x228] sm:$0xff]
    %v217 = vld [vmem:[#allocation2 + $0x230] sm:$0xff]
    %v218 = vld [vmem:[#allocation2 + $0x238] sm:$0xff]
    %v219 = vld [vmem:[#allocation2 + $0x240] sm:$0xff]
    %v220 = vld [vmem:[#allocation2 + $0x248] sm:$0xff]
    %v221 = vld [vmem:[#allocation2 + $0x250] sm:$0xff]
    %v222 = vld [vmem:[#allocation2 + $0x258] sm:$0xff]
    %v223 = vld [vmem:[#allocation2 + $0x260] sm:$0xff]
    %v224 = vld [vmem:[#allocation2 + $0x268] sm:$0xff]
    %v225 = vld [vmem:[#allocation2 + $0x270] sm:$0xff]
    %v226 = vld [vmem:[#allocation2 + $0x278] sm:$0xff]
    %v227 = vld [vmem:[#allocation2 + $0x280] sm:$0xff]
    %v228 = vld [vmem:[#allocation2 + $0x288] sm:$0xff]
    %v229 = vld [vmem:[#allocation2 + $0x290] sm:$0xff]
    %v230 = vld [vmem:[#allocation2 + $0x298] sm:$0xff]
    %v231 = vld [vmem:[#allocation2 + $0x2a0] sm:$0xff]
    %v232 = vld [vmem:[#allocation2 + $0x2a8] sm:$0xff]
    %v233 = vld [vmem:[#allocation2 + $0x2b0] sm:$0xff]
    %v234 = vld [vmem:[#allocation2 + $0x2b8] sm:$0xff]
    %v235 = vld [vmem:[#allocation2 + $0x2c0] sm:$0xff]
    %v236 = vld [vmem:[#allocation2 + $0x2c8] sm:$0xff]
    %v237 = vld [vmem:[#allocation2 + $0x2d0] sm:$0xff]
    %v238 = vld [vmem:[#allocation2 + $0x2d8] sm:$0xff]
    %v239 = vld [vmem:[#allocation2 + $0x2e0] sm:$0xff]
    %v240 = vld [vmem:[#allocation2 + $0x2e8] sm:$0xff]
    %v241 = vld [vmem:[#allocation2 + $0x2f0] sm:$0xff]
    %v242 = vld [vmem:[#allocation2 + $0x2f8] sm:$0xff]
    %v243 = vld [vmem:[#allocation2 + $0x300] sm:$0xff]
    %v244 = vld [vmem:[#allocation2 + $0x308] sm:$0xff]
    %v245 = vld [vmem:[#allocation2 + $0x310] sm:$0xff]
    %v246 = vld [vmem:[#allocation2 + $0x318] sm:$0xff]
    %v247 = vld [vmem:[#allocation2 + $0x320] sm:$0xff]
    %v248 = vld [vmem:[#allocation2 + $0x328] sm:$0xff]
    %v249 = vld [vmem:[#allocation2 + $0x330] sm:$0xff]
    %v250 = vld [vmem:[#allocation2 + $0x338] sm:$0xff]
    %v251 = vld [vmem:[#allocation2 + $0x340] sm:$0xff]
    %v252 = vld [vmem:[#allocation2 + $0x348] sm:$0xff]
    %v253 = vld [vmem:[#allocation2 + $0x350] sm:$0xff]
    %v254 = vld [vmem:[#allocation2 + $0x358] sm:$0xff]
    %v255 = vld [vmem:[#allocation2 + $0x360] sm:$0xff]
    %v256 = vld [vmem:[#allocation2 + $0x368] sm:$0xff]
    %v257 = vld [vmem:[#allocation2 + $0x370] sm:$0xff]
    %v258 = vld [vmem:[#allocation2 + $0x378] sm:$0xff]
    %v259 = vld [vmem:[#allocation2 + $0x380] sm:$0xff]
    %v260 = vld [vmem:[#allocation2 + $0x388] sm:$0xff]
    %v261 = vld [vmem:[#allocation2 + $0x390] sm:$0xff]
    %v262 = vld [vmem:[#allocation2 + $0x398] sm:$0xff]
    %v263 = vld [vmem:[#allocation2 + $0x3a0] sm:$0xff]
    %v264 = vld [vmem:[#allocation2 + $0x3a8] sm:$0xff]
    %v265 = vld [vmem:[#allocation2 + $0x3b0] sm:$0xff]
    %v266 = vld [vmem:[#allocation2 + $0x3b8] sm:$0xff]
    %v267 = vld [vmem:[#allocation2 + $0x3c0] sm:$0xff]
    %v268 = vld [vmem:[#allocation2 + $0x3c8] sm:$0xff]
    %v269 = vld [vmem:[#allocation2 + $0x3d0] sm:$0xff]
    %v270 = vld [vmem:[#allocation2 + $0x3d8] sm:$0xff]
    %v271 = vld [vmem:[#allocation2 + $0x3e0] sm:$0xff]
    %v272 = vld [vmem:[#allocation2 + $0x3e8] sm:$0xff]
    %v273 = vld [vmem:[#allocation2 + $0x3f0] sm:$0xff]
    %v274 = vld [vmem:[#allocation2 + $0x3f8] sm:$0xff]
    %v275 = vld [vmem:[%s2] ss:$8 sm:$0x3]
    %v277 = vlaneseq
    %v278 = vshrl.u32 %v277, 7
    %v279 = vsub.s32 0, %v278
    %v280 = vrot.slane %v275, %v279
    %v281 = vlaneseq
    %v282 = vshrl.u32 %v281, 7
    %v283 = vsub.s32 1, %v282
    %v284 = vrot.slane %v275, %v283
    %v415 = vunpack.c.l.b16 %v147
    %v416 = vunpack.c.h.b16 %v147
    %v417 = vunpack.c.l.b16 %v148
    %v418 = vunpack.c.h.b16 %v148
    %v419 = vunpack.c.l.b16 %v149
    %v420 = vunpack.c.h.b16 %v149
    %v421 = vunpack.c.l.b16 %v150
    %v422 = vunpack.c.h.b16 %v150
    %v423 = vunpack.c.l.b16 %v151
    %v424 = vunpack.c.h.b16 %v151
    %v425 = vunpack.c.l.b16 %v152
    %v426 = vunpack.c.h.b16 %v152
    %v427 = vunpack.c.l.b16 %v153
    %v428 = vunpack.c.h.b16 %v153
    %v429 = vunpack.c.l.b16 %v154
    %v430 = vunpack.c.h.b16 %v154
    %v431 = vunpack.c.l.b16 %v155
    %v432 = vunpack.c.h.b16 %v155
    %v433 = vunpack.c.l.b16 %v156
    %v434 = vunpack.c.h.b16 %v156
    %v435 = vunpack.c.l.b16 %v157
    %v436 = vunpack.c.h.b16 %v157
    %v437 = vunpack.c.l.b16 %v158
    %v438 = vunpack.c.h.b16 %v158
    %v439 = vunpack.c.l.b16 %v159
    %v440 = vunpack.c.h.b16 %v159
    %v441 = vunpack.c.l.b16 %v160
    %v442 = vunpack.c.h.b16 %v160
    %v443 = vunpack.c.l.b16 %v161
    %v444 = vunpack.c.h.b16 %v161
    %v445 = vunpack.c.l.b16 %v162
    %v446 = vunpack.c.h.b16 %v162
    %v447 = vunpack.c.l.b16 %v163
    %v448 = vunpack.c.h.b16 %v163
    %v449 = vunpack.c.l.b16 %v164
    %v450 = vunpack.c.h.b16 %v164
    %v451 = vunpack.c.l.b16 %v165
    %v452 = vunpack.c.h.b16 %v165
    %v453 = vunpack.c.l.b16 %v166
    %v454 = vunpack.c.h.b16 %v166
    %v455 = vunpack.c.l.b16 %v167
    %v456 = vunpack.c.h.b16 %v167
    %v457 = vunpack.c.l.b16 %v168
    %v458 = vunpack.c.h.b16 %v168
    %v459 = vunpack.c.l.b16 %v169
    %v460 = vunpack.c.h.b16 %v169
    %v461 = vunpack.c.l.b16 %v170
    %v462 = vunpack.c.h.b16 %v170
    %v463 = vunpack.c.l.b16 %v171
    %v464 = vunpack.c.h.b16 %v171
    %v465 = vunpack.c.l.b16 %v172
    %v466 = vunpack.c.h.b16 %v172
    %v467 = vunpack.c.l.b16 %v173
    %v468 = vunpack.c.h.b16 %v173
    %v469 = vunpack.c.l.b16 %v174
    %v470 = vunpack.c.h.b16 %v174
    %v471 = vunpack.c.l.b16 %v175
    %v472 = vunpack.c.h.b16 %v175
    %v473 = vunpack.c.l.b16 %v176
    %v474 = vunpack.c.h.b16 %v176
    %v475 = vunpack.c.l.b16 %v177
    %v476 = vunpack.c.h.b16 %v177
    %v477 = vunpack.c.l.b16 %v178
    %v478 = vunpack.c.h.b16 %v178
    %v479 = vunpack.c.l.b16 %v179
    %v480 = vunpack.c.h.b16 %v179
    %v481 = vunpack.c.l.b16 %v180
    %v482 = vunpack.c.h.b16 %v180
    %v483 = vunpack.c.l.b16 %v181
    %v484 = vunpack.c.h.b16 %v181
    %v485 = vunpack.c.l.b16 %v182
    %v486 = vunpack.c.h.b16 %v182
    %v487 = vunpack.c.l.b16 %v183
    %v488 = vunpack.c.h.b16 %v183
    %v489 = vunpack.c.l.b16 %v184
    %v490 = vunpack.c.h.b16 %v184
    %v491 = vunpack.c.l.b16 %v185
    %v492 = vunpack.c.h.b16 %v185
    %v493 = vunpack.c.l.b16 %v186
    %v494 = vunpack.c.h.b16 %v186
    %v495 = vunpack.c.l.b16 %v187
    %v496 = vunpack.c.h.b16 %v187
    %v497 = vunpack.c.l.b16 %v188
    %v498 = vunpack.c.h.b16 %v188
    %v499 = vunpack.c.l.b16 %v189
    %v500 = vunpack.c.h.b16 %v189
    %v501 = vunpack.c.l.b16 %v190
    %v502 = vunpack.c.h.b16 %v190
    %v503 = vunpack.c.l.b16 %v191
    %v504 = vunpack.c.h.b16 %v191
    %v505 = vunpack.c.l.b16 %v192
    %v506 = vunpack.c.h.b16 %v192
    %v507 = vunpack.c.l.b16 %v193
    %v508 = vunpack.c.h.b16 %v193
    %v509 = vunpack.c.l.b16 %v194
    %v510 = vunpack.c.h.b16 %v194
    %v511 = vunpack.c.l.b16 %v195
    %v512 = vunpack.c.h.b16 %v195
    %v513 = vunpack.c.l.b16 %v196
    %v514 = vunpack.c.h.b16 %v196
    %v515 = vunpack.c.l.b16 %v197
    %v516 = vunpack.c.h.b16 %v197
    %v517 = vunpack.c.l.b16 %v198
    %v518 = vunpack.c.h.b16 %v198
    %v519 = vunpack.c.l.b16 %v199
    %v520 = vunpack.c.h.b16 %v199
    %v521 = vunpack.c.l.b16 %v200
    %v522 = vunpack.c.h.b16 %v200
    %v523 = vunpack.c.l.b16 %v201
    %v524 = vunpack.c.h.b16 %v201
    %v525 = vunpack.c.l.b16 %v202
    %v526 = vunpack.c.h.b16 %v202
    %v527 = vunpack.c.l.b16 %v203
    %v528 = vunpack.c.h.b16 %v203
    %v529 = vunpack.c.l.b16 %v204
    %v530 = vunpack.c.h.b16 %v204
    %v531 = vunpack.c.l.b16 %v205
    %v532 = vunpack.c.h.b16 %v205
    %v533 = vunpack.c.l.b16 %v206
    %v534 = vunpack.c.h.b16 %v206
    %v535 = vunpack.c.l.b16 %v207
    %v536 = vunpack.c.h.b16 %v207
    %v537 = vunpack.c.l.b16 %v208
    %v538 = vunpack.c.h.b16 %v208
    %v539 = vunpack.c.l.b16 %v209
    %v540 = vunpack.c.h.b16 %v209
    %v541 = vunpack.c.l.b16 %v210
    %v542 = vunpack.c.h.b16 %v210
    %v543 = vunpack.c.l.b16 %v211
    %v544 = vunpack.c.h.b16 %v211
    %v545 = vunpack.c.l.b16 %v212
    %v546 = vunpack.c.h.b16 %v212
    %v547 = vunpack.c.l.b16 %v213
    %v548 = vunpack.c.h.b16 %v213
    %v549 = vunpack.c.l.b16 %v214
    %v550 = vunpack.c.h.b16 %v214
    %v551 = vunpack.c.l.b16 %v215
    %v552 = vunpack.c.h.b16 %v215
    %v553 = vunpack.c.l.b16 %v216
    %v554 = vunpack.c.h.b16 %v216
    %v555 = vunpack.c.l.b16 %v217
    %v556 = vunpack.c.h.b16 %v217
    %v557 = vunpack.c.l.b16 %v218
    %v558 = vunpack.c.h.b16 %v218
    %v559 = vunpack.c.l.b16 %v219
    %v560 = vunpack.c.h.b16 %v219
    %v561 = vunpack.c.l.b16 %v220
    %v562 = vunpack.c.h.b16 %v220
    %v563 = vunpack.c.l.b16 %v221
    %v564 = vunpack.c.h.b16 %v221
    %v565 = vunpack.c.l.b16 %v222
    %v566 = vunpack.c.h.b16 %v222
    %v567 = vunpack.c.l.b16 %v223
    %v568 = vunpack.c.h.b16 %v223
    %v569 = vunpack.c.l.b16 %v224
    %v570 = vunpack.c.h.b16 %v224
    %v571 = vunpack.c.l.b16 %v225
    %v572 = vunpack.c.h.b16 %v225
    %v573 = vunpack.c.l.b16 %v226
    %v574 = vunpack.c.h.b16 %v226
    %v575 = vunpack.c.l.b16 %v227
    %v576 = vunpack.c.h.b16 %v227
    %v577 = vunpack.c.l.b16 %v228
    %v578 = vunpack.c.h.b16 %v228
    %v579 = vunpack.c.l.b16 %v229
    %v580 = vunpack.c.h.b16 %v229
    %v581 = vunpack.c.l.b16 %v230
    %v582 = vunpack.c.h.b16 %v230
    %v583 = vunpack.c.l.b16 %v231
    %v584 = vunpack.c.h.b16 %v231
    %v585 = vunpack.c.l.b16 %v232
    %v586 = vunpack.c.h.b16 %v232
    %v587 = vunpack.c.l.b16 %v233
    %v588 = vunpack.c.h.b16 %v233
    %v589 = vunpack.c.l.b16 %v234
    %v590 = vunpack.c.h.b16 %v234
    %v591 = vunpack.c.l.b16 %v235
    %v592 = vunpack.c.h.b16 %v235
    %v593 = vunpack.c.l.b16 %v236
    %v594 = vunpack.c.h.b16 %v236
    %v595 = vunpack.c.l.b16 %v237
    %v596 = vunpack.c.h.b16 %v237
    %v597 = vunpack.c.l.b16 %v238
    %v598 = vunpack.c.h.b16 %v238
    %v599 = vunpack.c.l.b16 %v239
    %v600 = vunpack.c.h.b16 %v239
    %v601 = vunpack.c.l.b16 %v240
    %v602 = vunpack.c.h.b16 %v240
    %v603 = vunpack.c.l.b16 %v241
    %v604 = vunpack.c.h.b16 %v241
    %v605 = vunpack.c.l.b16 %v242
    %v606 = vunpack.c.h.b16 %v242
    %v607 = vunpack.c.l.b16 %v243
    %v608 = vunpack.c.h.b16 %v243
    %v609 = vunpack.c.l.b16 %v244
    %v610 = vunpack.c.h.b16 %v244
    %v611 = vunpack.c.l.b16 %v245
    %v612 = vunpack.c.h.b16 %v245
    %v613 = vunpack.c.l.b16 %v246
    %v614 = vunpack.c.h.b16 %v246
    %v615 = vunpack.c.l.b16 %v247
    %v616 = vunpack.c.h.b16 %v247
    %v617 = vunpack.c.l.b16 %v248
    %v618 = vunpack.c.h.b16 %v248
    %v619 = vunpack.c.l.b16 %v249
    %v620 = vunpack.c.h.b16 %v249
    %v621 = vunpack.c.l.b16 %v250
    %v622 = vunpack.c.h.b16 %v250
    %v623 = vunpack.c.l.b16 %v251
    %v624 = vunpack.c.h.b16 %v251
    %v625 = vunpack.c.l.b16 %v252
    %v626 = vunpack.c.h.b16 %v252
    %v627 = vunpack.c.l.b16 %v253
    %v628 = vunpack.c.h.b16 %v253
    %v629 = vunpack.c.l.b16 %v254
    %v630 = vunpack.c.h.b16 %v254
    %v631 = vunpack.c.l.b16 %v255
    %v632 = vunpack.c.h.b16 %v255
    %v633 = vunpack.c.l.b16 %v256
    %v634 = vunpack.c.h.b16 %v256
    %v635 = vunpack.c.l.b16 %v257
    %v636 = vunpack.c.h.b16 %v257
    %v637 = vunpack.c.l.b16 %v258
    %v638 = vunpack.c.h.b16 %v258
    %v639 = vunpack.c.l.b16 %v259
    %v640 = vunpack.c.h.b16 %v259
    %v641 = vunpack.c.l.b16 %v260
    %v642 = vunpack.c.h.b16 %v260
    %v643 = vunpack.c.l.b16 %v261
    %v644 = vunpack.c.h.b16 %v261
    %v645 = vunpack.c.l.b16 %v262
    %v646 = vunpack.c.h.b16 %v262
    %v647 = vunpack.c.l.b16 %v263
    %v648 = vunpack.c.h.b16 %v263
    %v649 = vunpack.c.l.b16 %v264
    %v650 = vunpack.c.h.b16 %v264
    %v651 = vunpack.c.l.b16 %v265
    %v652 = vunpack.c.h.b16 %v265
    %v653 = vunpack.c.l.b16 %v266
    %v654 = vunpack.c.h.b16 %v266
    %v655 = vunpack.c.l.b16 %v267
    %v656 = vunpack.c.h.b16 %v267
    %v657 = vunpack.c.l.b16 %v268
    %v658 = vunpack.c.h.b16 %v268
    %v659 = vunpack.c.l.b16 %v269
    %v660 = vunpack.c.h.b16 %v269
    %v661 = vunpack.c.l.b16 %v270
    %v662 = vunpack.c.h.b16 %v270
    %v663 = vunpack.c.l.b16 %v271
    %v664 = vunpack.c.h.b16 %v271
    %v665 = vunpack.c.l.b16 %v272
    %v666 = vunpack.c.h.b16 %v272
    %v667 = vunpack.c.l.b16 %v273
    %v668 = vunpack.c.h.b16 %v273
    %v669 = vunpack.c.l.b16 %v274
    %v670 = vunpack.c.h.b16 %v274
    %v671 = vpack.c.b16 %v417, %v415
    %v672 = vpack.c.b16 %v418, %v416
    %v673 = vpack.c.b16 %v421, %v419
    %v674 = vpack.c.b16 %v422, %v420
    %v675 = vpack.c.b16 %v425, %v423
    %v676 = vpack.c.b16 %v426, %v424
    %v677 = vpack.c.b16 %v429, %v427
    %v678 = vpack.c.b16 %v430, %v428
    %v679 = vpack.c.b16 %v433, %v431
    %v680 = vpack.c.b16 %v434, %v432
    %v681 = vpack.c.b16 %v437, %v435
    %v682 = vpack.c.b16 %v438, %v436
    %v683 = vpack.c.b16 %v441, %v439
    %v684 = vpack.c.b16 %v442, %v440
    %v685 = vpack.c.b16 %v445, %v443
    %v686 = vpack.c.b16 %v446, %v444
    %v687 = vpack.c.b16 %v449, %v447
    %v688 = vpack.c.b16 %v450, %v448
    %v689 = vpack.c.b16 %v453, %v451
    %v690 = vpack.c.b16 %v454, %v452
    %v691 = vpack.c.b16 %v457, %v455
    %v692 = vpack.c.b16 %v458, %v456
    %v693 = vpack.c.b16 %v461, %v459
    %v694 = vpack.c.b16 %v462, %v460
    %v695 = vpack.c.b16 %v465, %v463
    %v696 = vpack.c.b16 %v466, %v464
    %v697 = vpack.c.b16 %v469, %v467
    %v698 = vpack.c.b16 %v470, %v468
    %v699 = vpack.c.b16 %v473, %v471
    %v700 = vpack.c.b16 %v474, %v472
    %v701 = vpack.c.b16 %v477, %v475
    %v702 = vpack.c.b16 %v478, %v476
    %v703 = vpack.c.b16 %v481, %v479
    %v704 = vpack.c.b16 %v482, %v480
    %v705 = vpack.c.b16 %v485, %v483
    %v706 = vpack.c.b16 %v486, %v484
    %v707 = vpack.c.b16 %v489, %v487
    %v708 = vpack.c.b16 %v490, %v488
    %v709 = vpack.c.b16 %v493, %v491
    %v710 = vpack.c.b16 %v494, %v492
    %v711 = vpack.c.b16 %v497, %v495
    %v712 = vpack.c.b16 %v498, %v496
    %v713 = vpack.c.b16 %v501, %v499
    %v714 = vpack.c.b16 %v502, %v500
    %v715 = vpack.c.b16 %v505, %v503
    %v716 = vpack.c.b16 %v506, %v504
    %v717 = vpack.c.b16 %v509, %v507
    %v718 = vpack.c.b16 %v510, %v508
    %v719 = vpack.c.b16 %v513, %v511
    %v720 = vpack.c.b16 %v514, %v512
    %v721 = vpack.c.b16 %v517, %v515
    %v722 = vpack.c.b16 %v518, %v516
    %v723 = vpack.c.b16 %v521, %v519
    %v724 = vpack.c.b16 %v522, %v520
    %v725 = vpack.c.b16 %v525, %v523
    %v726 = vpack.c.b16 %v526, %v524
    %v727 = vpack.c.b16 %v529, %v527
    %v728 = vpack.c.b16 %v530, %v528
    %v729 = vpack.c.b16 %v533, %v531
    %v730 = vpack.c.b16 %v534, %v532
    %v731 = vpack.c.b16 %v537, %v535
    %v732 = vpack.c.b16 %v538, %v536
    %v733 = vpack.c.b16 %v541, %v539
    %v734 = vpack.c.b16 %v542, %v540
    %v735 = vpack.c.b16 %v545, %v543
    %v736 = vpack.c.b16 %v546, %v544
    %v737 = vpack.c.b16 %v549, %v547
    %v738 = vpack.c.b16 %v550, %v548
    %v739 = vpack.c.b16 %v553, %v551
    %v740 = vpack.c.b16 %v554, %v552
    %v741 = vpack.c.b16 %v557, %v555
    %v742 = vpack.c.b16 %v558, %v556
    %v743 = vpack.c.b16 %v561, %v559
    %v744 = vpack.c.b16 %v562, %v560
    %v745 = vpack.c.b16 %v565, %v563
    %v746 = vpack.c.b16 %v566, %v564
    %v747 = vpack.c.b16 %v569, %v567
    %v748 = vpack.c.b16 %v570, %v568
    %v749 = vpack.c.b16 %v573, %v571
    %v750 = vpack.c.b16 %v574, %v572
    %v751 = vpack.c.b16 %v577, %v575
    %v752 = vpack.c.b16 %v578, %v576
    %v753 = vpack.c.b16 %v581, %v579
    %v754 = vpack.c.b16 %v582, %v580
    %v755 = vpack.c.b16 %v585, %v583
    %v756 = vpack.c.b16 %v586, %v584
    %v757 = vpack.c.b16 %v589, %v587
    %v758 = vpack.c.b16 %v590, %v588
    %v759 = vpack.c.b16 %v593, %v591
    %v760 = vpack.c.b16 %v594, %v592
    %v761 = vpack.c.b16 %v597, %v595
    %v762 = vpack.c.b16 %v598, %v596
    %v763 = vpack.c.b16 %v601, %v599
    %v764 = vpack.c.b16 %v602, %v600
    %v765 = vpack.c.b16 %v605, %v603
    %v766 = vpack.c.b16 %v606, %v604
    %v767 = vpack.c.b16 %v609, %v607
    %v768 = vpack.c.b16 %v610, %v608
    %v769 = vpack.c.b16 %v613, %v611
    %v770 = vpack.c.b16 %v614, %v612
    %v771 = vpack.c.b16 %v617, %v615
    %v772 = vpack.c.b16 %v618, %v616
    %v773 = vpack.c.b16 %v621, %v619
    %v774 = vpack.c.b16 %v622, %v620
    %v775 = vpack.c.b16 %v625, %v623
    %v776 = vpack.c.b16 %v626, %v624
    %v777 = vpack.c.b16 %v629, %v627
    %v778 = vpack.c.b16 %v630, %v628
    %v779 = vpack.c.b16 %v633, %v631
    %v780 = vpack.c.b16 %v634, %v632
    %v781 = vpack.c.b16 %v637, %v635
    %v782 = vpack.c.b16 %v638, %v636
    %v783 = vpack.c.b16 %v641, %v639
    %v784 = vpack.c.b16 %v642, %v640
    %v785 = vpack.c.b16 %v645, %v643
    %v786 = vpack.c.b16 %v646, %v644
    %v787 = vpack.c.b16 %v649, %v647
    %v788 = vpack.c.b16 %v650, %v648
    %v789 = vpack.c.b16 %v653, %v651
    %v790 = vpack.c.b16 %v654, %v652
    %v791 = vpack.c.b16 %v657, %v655
    %v792 = vpack.c.b16 %v658, %v656
    %v793 = vpack.c.b16 %v661, %v659
    %v794 = vpack.c.b16 %v662, %v660
    %v795 = vpack.c.b16 %v665, %v663
    %v796 = vpack.c.b16 %v666, %v664
    %v797 = vpack.c.b16 %v669, %v667
    %v798 = vpack.c.b16 %v670, %v668
    %927 = vmatprep.subr.bf16.mxu0 %v672
    %928 = vmatpush1.bf16.msra.mxu0 %v671
    %929 = vmatprep.subr.bf16.mxu0 %v674
    %930 = vmatpush1.bf16.msra.mxu0 %v673
    %931 = vmatprep.subr.bf16.mxu0 %v676
    %932 = vmatpush1.bf16.msra.mxu0 %v675
    %933 = vmatprep.subr.bf16.mxu0 %v678
    %934 = vmatpush1.bf16.msra.mxu0 %v677
    %935 = vmatprep.subr.bf16.mxu0 %v680
    %936 = vmatpush1.bf16.msra.mxu0 %v679
    %937 = vmatprep.subr.bf16.mxu0 %v682
    %938 = vmatpush1.bf16.msra.mxu0 %v681
    %939 = vmatprep.subr.bf16.mxu0 %v684
    %940 = vmatpush1.bf16.msra.mxu0 %v683
    %941 = vmatprep.subr.bf16.mxu0 %v686
    %942 = vmatpush1.bf16.msra.mxu0 %v685
    %943 = vmatprep.subr.bf16.mxu0 %v688
    %944 = vmatpush1.bf16.msra.mxu0 %v687
    %945 = vmatprep.subr.bf16.mxu0 %v690
    %946 = vmatpush1.bf16.msra.mxu0 %v689
    %947 = vmatprep.subr.bf16.mxu0 %v692
    %948 = vmatpush1.bf16.msra.mxu0 %v691
    %949 = vmatprep.subr.bf16.mxu0 %v694
    %950 = vmatpush1.bf16.msra.mxu0 %v693
    %951 = vmatprep.subr.bf16.mxu0 %v696
    %952 = vmatpush1.bf16.msra.mxu0 %v695
    %953 = vmatprep.subr.bf16.mxu0 %v698
    %954 = vmatpush1.bf16.msra.mxu0 %v697
    %955 = vmatprep.subr.bf16.mxu0 %v700
    %956 = vmatpush1.bf16.msra.mxu0 %v699
    %957 = vmatprep.subr.bf16.mxu0 %v702
    %958 = vmatpush1.bf16.msra.mxu0 %v701
    %959 = vmatprep.mubr.bf16.mxu0 %v140
    %960 = vmatmul.mubr.bf16.gmra.mrb[0].mxu0 %v139
    %v961 = vpop.f32.mrb[0].mxu0
    %v962 = vadd.f32 %v280, %v961
    %v963 = vpop.f32.mrb[0].mxu0
    %v964 = vadd.f32 %v284, %v963
    %v965 = vpop.f32.mrb[0].mxu0
    %v966 = vpop.f32.mrb[0].mxu0
    %967 = vdwg.mxu0
    %968 = vmatprep.subr.bf16.mxu0 %v704
    %969 = vmatpush1.bf16.msra.mxu0 %v703
    %970 = vmatprep.subr.bf16.mxu0 %v706
    %971 = vmatpush1.bf16.msra.mxu0 %v705
    %972 = vmatprep.subr.bf16.mxu0 %v708
    %973 = vmatpush1.bf16.msra.mxu0 %v707
    %974 = vmatprep.subr.bf16.mxu0 %v710
    %975 = vmatpush1.bf16.msra.mxu0 %v709
    %976 = vmatprep.subr.bf16.mxu0 %v712
    %977 = vmatpush1.bf16.msra.mxu0 %v711
    %978 = vmatprep.subr.bf16.mxu0 %v714
    %979 = vmatpush1.bf16.msra.mxu0 %v713
    %980 = vmatprep.subr.bf16.mxu0 %v716
    %981 = vmatpush1.bf16.msra.mxu0 %v715
    %982 = vmatprep.subr.bf16.mxu0 %v718
    %983 = vmatpush1.bf16.msra.mxu0 %v717
    %984 = vmatprep.subr.bf16.mxu0 %v720
    %985 = vmatpush1.bf16.msra.mxu0 %v719
    %986 = vmatprep.subr.bf16.mxu0 %v722
    %987 = vmatpush1.bf16.msra.mxu0 %v721
    %988 = vmatprep.subr.bf16.mxu0 %v724
    %989 = vmatpush1.bf16.msra.mxu0 %v723
    %990 = vmatprep.subr.bf16.mxu0 %v726
    %991 = vmatpush1.bf16.msra.mxu0 %v725
    %992 = vmatprep.subr.bf16.mxu0 %v728
    %993 = vmatpush1.bf16.msra.mxu0 %v727
    %994 = vmatprep.subr.bf16.mxu0 %v730
    %995 = vmatpush1.bf16.msra.mxu0 %v729
    %996 = vmatprep.subr.bf16.mxu0 %v732
    %997 = vmatpush1.bf16.msra.mxu0 %v731
    %998 = vmatprep.subr.bf16.mxu0 %v734
    %999 = vmatpush1.bf16.msra.mxu0 %v733
    %1000 = vmatprep.mubr.bf16.mxu0 %v142
    %1001 = vmatmul.mubr.bf16.gmra.mrb[0].mxu0 %v141
    %v1002 = vpop.f32.mrb[0].mxu0
    %v1003 = vadd.f32 %v962, %v1002
    %v1004 = vpop.f32.mrb[0].mxu0
    %v1005 = vadd.f32 %v964, %v1004
    %v1006 = vpop.f32.mrb[0].mxu0
    %v1007 = vpop.f32.mrb[0].mxu0
    %1008 = vdwg.mxu0
    %1009 = vmatprep.subr.bf16.mxu0 %v736
    %1010 = vmatpush1.bf16.msra.mxu0 %v735
    %1011 = vmatprep.subr.bf16.mxu0 %v738
    %1012 = vmatpush1.bf16.msra.mxu0 %v737
    %1013 = vmatprep.subr.bf16.mxu0 %v740
    %1014 = vmatpush1.bf16.msra.mxu0 %v739
    %1015 = vmatprep.subr.bf16.mxu0 %v742
    %1016 = vmatpush1.bf16.msra.mxu0 %v741
    %1017 = vmatprep.subr.bf16.mxu0 %v744
    %1018 = vmatpush1.bf16.msra.mxu0 %v743
    %1019 = vmatprep.subr.bf16.mxu0 %v746
    %1020 = vmatpush1.bf16.msra.mxu0 %v745
    %1021 = vmatprep.subr.bf16.mxu0 %v748
    %1022 = vmatpush1.bf16.msra.mxu0 %v747
    %1023 = vmatprep.subr.bf16.mxu0 %v750
    %1024 = vmatpush1.bf16.msra.mxu0 %v749
    %1025 = vmatprep.subr.bf16.mxu0 %v752
    %1026 = vmatpush1.bf16.msra.mxu0 %v751
    %1027 = vmatprep.subr.bf16.mxu0 %v754
    %1028 = vmatpush1.bf16.msra.mxu0 %v753
    %1029 = vmatprep.subr.bf16.mxu0 %v756
    %1030 = vmatpush1.bf16.msra.mxu0 %v755
    %1031 = vmatprep.subr.bf16.mxu0 %v758
    %1032 = vmatpush1.bf16.msra.mxu0 %v757
    %1033 = vmatprep.subr.bf16.mxu0 %v760
    %1034 = vmatpush1.bf16.msra.mxu0 %v759
    %1035 = vmatprep.subr.bf16.mxu0 %v762
    %1036 = vmatpush1.bf16.msra.mxu0 %v761
    %1037 = vmatprep.subr.bf16.mxu0 %v764
    %1038 = vmatpush1.bf16.msra.mxu0 %v763
    %1039 = vmatprep.subr.bf16.mxu0 %v766
    %1040 = vmatpush1.bf16.msra.mxu0 %v765
    %1041 = vmatprep.mubr.bf16.mxu0 %v144
    %1042 = vmatmul.mubr.bf16.gmra.mrb[0].mxu0 %v143
    %v1043 = vpop.f32.mrb[0].mxu0
    %v1044 = vadd.f32 %v1003, %v1043
    %v1045 = vpop.f32.mrb[0].mxu0
    %v1046 = vadd.f32 %v1005, %v1045
    %v1047 = vpop.f32.mrb[0].mxu0
    %v1048 = vpop.f32.mrb[0].mxu0
    %1049 = vdwg.mxu0
    %1050 = vmatprep.subr.bf16.mxu0 %v768
    %1051 = vmatpush1.bf16.msra.mxu0 %v767
    %1052 = vmatprep.subr.bf16.mxu0 %v770
    %1053 = vmatpush1.bf16.msra.mxu0 %v769
    %1054 = vmatprep.subr.bf16.mxu0 %v772
    %1055 = vmatpush1.bf16.msra.mxu0 %v771
    %1056 = vmatprep.subr.bf16.mxu0 %v774
    %1057 = vmatpush1.bf16.msra.mxu0 %v773
    %1058 = vmatprep.subr.bf16.mxu0 %v776
    %1059 = vmatpush1.bf16.msra.mxu0 %v775
    %1060 = vmatprep.subr.bf16.mxu0 %v778
    %1061 = vmatpush1.bf16.msra.mxu0 %v777
    %1062 = vmatprep.subr.bf16.mxu0 %v780
    %1063 = vmatpush1.bf16.msra.mxu0 %v779
    %1064 = vmatprep.subr.bf16.mxu0 %v782
    %1065 = vmatpush1.bf16.msra.mxu0 %v781
    %1066 = vmatprep.subr.bf16.mxu0 %v784
    %1067 = vmatpush1.bf16.msra.mxu0 %v783
    %1068 = vmatprep.subr.bf16.mxu0 %v786
    %1069 = vmatpush1.bf16.msra.mxu0 %v785
    %1070 = vmatprep.subr.bf16.mxu0 %v788
    %1071 = vmatpush1.bf16.msra.mxu0 %v787
    %1072 = vmatprep.subr.bf16.mxu0 %v790
    %1073 = vmatpush1.bf16.msra.mxu0 %v789
    %1074 = vmatprep.subr.bf16.mxu0 %v792
    %1075 = vmatpush1.bf16.msra.mxu0 %v791
    %1076 = vmatprep.subr.bf16.mxu0 %v794
    %1077 = vmatpush1.bf16.msra.mxu0 %v793
    %1078 = vmatprep.subr.bf16.mxu0 %v796
    %1079 = vmatpush1.bf16.msra.mxu0 %v795
    %1080 = vmatprep.subr.bf16.mxu0 %v798
    %1081 = vmatpush1.bf16.msra.mxu0 %v797
    %1082 = vmatprep.mubr.bf16.mxu0 %v146
    %1083 = vmatmul.mubr.bf16.gmra.mrb[0].mxu0 %v145
    %v1084 = vpop.f32.mrb[0].mxu0
    %v1085 = vadd.f32 %v1044, %v1084
    %v1086 = vpop.f32.mrb[0].mxu0
    %v1087 = vadd.f32 %v1046, %v1086
    %v1088 = vpop.f32.mrb[0].mxu0
    %v1089 = vpop.f32.mrb[0].mxu0
    %1090 = vdwg.mxu0
    %v1091 = vmax.f32 %v1085, 0.0
    %v1092 = vmax.f32 %v1087, 0.0
    %v1093 = vpack.c.bf16 %v1091, %v1091
    %v1094 = vpack.c.bf16 %v1092, %v1092
    %v1095 = vld [vmem:[#allocation5] sm:$0xf]
    %v1096 = vld [vmem:[#allocation5 + $0x4] sm:$0xf]
    %v1097 = vld [vmem:[#allocation5 + $0x8] sm:$0xf]
    %v1098 = vld [vmem:[#allocation5 + $0xc] sm:$0xf]
    %v1099 = vld [vmem:[#allocation5 + $0x10] sm:$0xf]
    %v1100 = vld [vmem:[#allocation5 + $0x14] sm:$0xf]
    %v1101 = vld [vmem:[#allocation5 + $0x18] sm:$0xf]
    %v1102 = vld [vmem:[#allocation5 + $0x1c] sm:$0xf]
    %v1103 = vld [vmem:[#allocation5 + $0x20] sm:$0xf]
    %v1104 = vld [vmem:[#allocation5 + $0x24] sm:$0xf]
    %v1105 = vld [vmem:[#allocation5 + $0x28] sm:$0xf]
    %v1106 = vld [vmem:[#allocation5 + $0x2c] sm:$0xf]
    %v1107 = vld [vmem:[#allocation5 + $0x30] sm:$0xf]
    %v1108 = vld [vmem:[#allocation5 + $0x34] sm:$0xf]
    %v1109 = vld [vmem:[#allocation5 + $0x38] sm:$0xf]
    %v1110 = vld [vmem:[#allocation5 + $0x3c] sm:$0xf]
    %v1111 = vld [vmem:[#allocation5 + $0x40] sm:$0xf]
    %v1112 = vld [vmem:[#allocation5 + $0x44] sm:$0xf]
    %v1113 = vld [vmem:[#allocation5 + $0x48] sm:$0xf]
    %v1114 = vld [vmem:[#allocation5 + $0x4c] sm:$0xf]
    %v1115 = vld [vmem:[#allocation5 + $0x50] sm:$0xf]
    %v1116 = vld [vmem:[#allocation5 + $0x54] sm:$0xf]
    %v1117 = vld [vmem:[#allocation5 + $0x58] sm:$0xf]
    %v1118 = vld [vmem:[#allocation5 + $0x5c] sm:$0xf]
    %v1119 = vld [vmem:[#allocation5 + $0x60] sm:$0xf]
    %v1120 = vld [vmem:[#allocation5 + $0x64] sm:$0xf]
    %v1121 = vld [vmem:[#allocation5 + $0x68] sm:$0xf]
    %v1122 = vld [vmem:[#allocation5 + $0x6c] sm:$0xf]
    %v1123 = vld [vmem:[#allocation5 + $0x70] sm:$0xf]
    %v1124 = vld [vmem:[#allocation5 + $0x74] sm:$0xf]
    %v1125 = vld [vmem:[#allocation5 + $0x78] sm:$0xf]
    %v1126 = vld [vmem:[#allocation5 + $0x7c] sm:$0xf]
    %v1127 = vld [vmem:[%s2 + $0x1] ss:$0 sm:$0xff]
    %v1160 = vunpack.c.l.b16 %v1095
    %v1161 = vunpack.c.l.b16 %v1096
    %v1162 = vunpack.c.l.b16 %v1097
    %v1163 = vunpack.c.l.b16 %v1098
    %v1164 = vunpack.c.l.b16 %v1099
    %v1165 = vunpack.c.l.b16 %v1100
    %v1166 = vunpack.c.l.b16 %v1101
    %v1167 = vunpack.c.l.b16 %v1102
    %v1168 = vunpack.c.l.b16 %v1103
    %v1169 = vunpack.c.l.b16 %v1104
    %v1170 = vunpack.c.l.b16 %v1105
    %v1171 = vunpack.c.l.b16 %v1106
    %v1172 = vunpack.c.l.b16 %v1107
    %v1173 = vunpack.c.l.b16 %v1108
    %v1174 = vunpack.c.l.b16 %v1109
    %v1175 = vunpack.c.l.b16 %v1110
    %v1176 = vunpack.c.l.b16 %v1111
    %v1177 = vunpack.c.l.b16 %v1112
    %v1178 = vunpack.c.l.b16 %v1113
    %v1179 = vunpack.c.l.b16 %v1114
    %v1180 = vunpack.c.l.b16 %v1115
    %v1181 = vunpack.c.l.b16 %v1116
    %v1182 = vunpack.c.l.b16 %v1117
    %v1183 = vunpack.c.l.b16 %v1118
    %v1184 = vunpack.c.l.b16 %v1119
    %v1185 = vunpack.c.l.b16 %v1120
    %v1186 = vunpack.c.l.b16 %v1121
    %v1187 = vunpack.c.l.b16 %v1122
    %v1188 = vunpack.c.l.b16 %v1123
    %v1189 = vunpack.c.l.b16 %v1124
    %v1190 = vunpack.c.l.b16 %v1125
    %v1191 = vunpack.c.l.b16 %v1126
    %v1192 = vpack.c.b16 %v1161, %v1160
    %v1193 = vpack.c.b16 %v1163, %v1162
    %v1194 = vpack.c.b16 %v1165, %v1164
    %v1195 = vpack.c.b16 %v1167, %v1166
    %v1196 = vpack.c.b16 %v1169, %v1168
    %v1197 = vpack.c.b16 %v1171, %v1170
    %v1198 = vpack.c.b16 %v1173, %v1172
    %v1199 = vpack.c.b16 %v1175, %v1174
    %v1200 = vpack.c.b16 %v1177, %v1176
    %v1201 = vpack.c.b16 %v1179, %v1178
    %v1202 = vpack.c.b16 %v1181, %v1180
    %v1203 = vpack.c.b16 %v1183, %v1182
    %v1204 = vpack.c.b16 %v1185, %v1184
    %v1205 = vpack.c.b16 %v1187, %v1186
    %v1206 = vpack.c.b16 %v1189, %v1188
    %v1207 = vpack.c.b16 %v1191, %v1190
    %1224 = vmatprep.subr.bf16.mxu0 0
    %1225 = vmatpush1.bf16.msra.mxu0 %v1192
    %1226 = vmatprep.subr.bf16.mxu0 0
    %1227 = vmatpush1.bf16.msra.mxu0 %v1193
    %1228 = vmatprep.subr.bf16.mxu0 0
    %1229 = vmatpush1.bf16.msra.mxu0 %v1194
    %1230 = vmatprep.subr.bf16.mxu0 0
    %1231 = vmatpush1.bf16.msra.mxu0 %v1195
    %1232 = vmatprep.subr.bf16.mxu0 0
    %1233 = vmatpush1.bf16.msra.mxu0 %v1196
    %1234 = vmatprep.subr.bf16.mxu0 0
    %1235 = vmatpush1.bf16.msra.mxu0 %v1197
    %1236 = vmatprep.subr.bf16.mxu0 0
    %1237 = vmatpush1.bf16.msra.mxu0 %v1198
    %1238 = vmatprep.subr.bf16.mxu0 0
    %1239 = vmatpush1.bf16.msra.mxu0 %v1199
    %1240 = vmatprep.subr.bf16.mxu0 0
    %1241 = vmatpush1.bf16.msra.mxu0 %v1200
    %1242 = vmatprep.subr.bf16.mxu0 0
    %1243 = vmatpush1.bf16.msra.mxu0 %v1201
    %1244 = vmatprep.subr.bf16.mxu0 0
    %1245 = vmatpush1.bf16.msra.mxu0 %v1202
    %1246 = vmatprep.subr.bf16.mxu0 0
    %1247 = vmatpush1.bf16.msra.mxu0 %v1203
    %1248 = vmatprep.subr.bf16.mxu0 0
    %1249 = vmatpush1.bf16.msra.mxu0 %v1204
    %1250 = vmatprep.subr.bf16.mxu0 0
    %1251 = vmatpush1.bf16.msra.mxu0 %v1205
    %1252 = vmatprep.subr.bf16.mxu0 0
    %1253 = vmatpush1.bf16.msra.mxu0 %v1206
    %1254 = vmatprep.subr.bf16.mxu0 0
    %1255 = vmatpush1.bf16.msra.mxu0 %v1207
    %1256 = vmatprep.mubr.bf16.mxu0 %v1094
    %1257 = vmatmul.mubr.bf16.gmra.mrb[0].mxu0 %v1093
    %v1258 = vpop.f32.mrb[0].mxu0
    %v1259 = vadd.f32 %v1127, %v1258
    %v1260 = vpop.f32.mrb[0].mxu0
    %v1261 = vpop.f32.mrb[0].mxu0
    %v1262 = vpop.f32.mrb[0].mxu0
    %1263 = vdwg.mxu0
    %v1264 = vmax.f32 %v1259, 0.0
    %v1265 = vpack.c.bf16 %v1264, %v1264
    %v1266 = vld [vmem:[%s5] sm:$0xf]
    %v1267 = vld [vmem:[%s5 + $0x4] sm:$0xf]
    %v1268 = vld [vmem:[%s5 + $0x8] sm:$0xf]
    %v1269 = vld [vmem:[%s5 + $0xc] sm:$0xf]
    %v1270 = vld [vmem:[%s5 + $0x10] sm:$0xf]
    %v1271 = vld [vmem:[%s5 + $0x14] sm:$0xf]
    %v1272 = vld [vmem:[%s5 + $0x18] sm:$0xf]
    %v1273 = vld [vmem:[%s5 + $0x1c] sm:$0xf]
    %v1274 = vld [vmem:[%s5 + $0x20] sm:$0xf]
    %v1275 = vld [vmem:[%s5 + $0x24] sm:$0xf]
    %v1276 = vld [vmem:[%s5 + $0x28] sm:$0xf]
    %v1277 = vld [vmem:[%s5 + $0x2c] sm:$0xf]
    %v1278 = vld [vmem:[%s5 + $0x30] sm:$0xf]
    %v1279 = vld [vmem:[%s5 + $0x34] sm:$0xf]
    %v1280 = vld [vmem:[%s5 + $0x38] sm:$0xf]
    %v1281 = vld [vmem:[%s5 + $0x3c] sm:$0xf]
    %v1282 = vld [vmem:[%s2 + $0x2] ss:$0 sm:$0xff]
    %v1299 = vunpack.c.l.b16 %v1266
    %v1300 = vunpack.c.l.b16 %v1267
    %v1301 = vunpack.c.l.b16 %v1268
    %v1302 = vunpack.c.l.b16 %v1269
    %v1303 = vunpack.c.l.b16 %v1270
    %v1304 = vunpack.c.l.b16 %v1271
    %v1305 = vunpack.c.l.b16 %v1272
    %v1306 = vunpack.c.l.b16 %v1273
    %v1307 = vunpack.c.l.b16 %v1274
    %v1308 = vunpack.c.l.b16 %v1275
    %v1309 = vunpack.c.l.b16 %v1276
    %v1310 = vunpack.c.l.b16 %v1277
    %v1311 = vunpack.c.l.b16 %v1278
    %v1312 = vunpack.c.l.b16 %v1279
    %v1313 = vunpack.c.l.b16 %v1280
    %v1314 = vunpack.c.l.b16 %v1281
    %v1315 = vpack.c.b16 %v1300, %v1299
    %v1316 = vpack.c.b16 %v1302, %v1301
    %v1317 = vpack.c.b16 %v1304, %v1303
    %v1318 = vpack.c.b16 %v1306, %v1305
    %v1319 = vpack.c.b16 %v1308, %v1307
    %v1320 = vpack.c.b16 %v1310, %v1309
    %v1321 = vpack.c.b16 %v1312, %v1311
    %v1322 = vpack.c.b16 %v1314, %v1313
    %1331 = vmatprep.subr.bf16.mxu0 0
    %1332 = vmatpush1.bf16.msra.mxu0 %v1315
    %1333 = vmatprep.subr.bf16.mxu0 0
    %1334 = vmatpush1.bf16.msra.mxu0 %v1316
    %1335 = vmatprep.subr.bf16.mxu0 0
    %1336 = vmatpush1.bf16.msra.mxu0 %v1317
    %1337 = vmatprep.subr.bf16.mxu0 0
    %1338 = vmatpush1.bf16.msra.mxu0 %v1318
    %1339 = vmatprep.subr.bf16.mxu0 0
    %1340 = vmatpush1.bf16.msra.mxu0 %v1319
    %1341 = vmatprep.subr.bf16.mxu0 0
    %1342 = vmatpush1.bf16.msra.mxu0 %v1320
    %1343 = vmatprep.subr.bf16.mxu0 0
    %1344 = vmatpush1.bf16.msra.mxu0 %v1321
    %1345 = vmatprep.subr.bf16.mxu0 0
    %1346 = vmatpush1.bf16.msra.mxu0 %v1322
    %1347 = vmatprep.subr.bf16.mxu0 0
    %1348 = vmatpush1.bf16.msra.mxu0 0
    %1349 = vmatprep.subr.bf16.mxu0 0
    %1350 = vmatpush1.bf16.msra.mxu0 0
    %1351 = vmatprep.subr.bf16.mxu0 0
    %1352 = vmatpush1.bf16.msra.mxu0 0
    %1353 = vmatprep.subr.bf16.mxu0 0
    %1354 = vmatpush1.bf16.msra.mxu0 0
    %1355 = vmatprep.subr.bf16.mxu0 0
    %1356 = vmatpush1.bf16.msra.mxu0 0
    %1357 = vmatprep.subr.bf16.mxu0 0
    %1358 = vmatpush1.bf16.msra.mxu0 0
    %1359 = vmatprep.subr.bf16.mxu0 0
    %1360 = vmatpush1.bf16.msra.mxu0 0
    %1361 = vmatprep.subr.bf16.mxu0 0
    %1362 = vmatpush1.bf16.msra.mxu0 0
    %1363 = vmatprep.mubr.bf16.mxu0 0
    %1364 = vmatmul.mubr.bf16.gmra.mrb[0].mxu0 %v1265
    %v1365 = vpop.f32.mrb[0].mxu0
    %v1366 = vadd.f32 %v1282, %v1365
    %v1367 = vpop.f32.mrb[0].mxu0
    %v1368 = vpop.f32.mrb[0].mxu0
    %v1369 = vpop.f32.mrb[0].mxu0
    %1370 = vdwg.mxu0
    %v1371 = vld [vmem:[%s1] sm:$0x1]
    %v1372 = vmul.f32 %v1366, 0.5
    %v1373 = vmul.f32 %v1372, 1.442695
    %v1374 = vpow.pop %v1373
    %v1377 = vunpack.c.l.s4 1966171168
    %v1378 = vunpack.c.0.s8 %v1377
    %v1379 = vlaneseq
    %v1380 = vshrl.u32 %v1379, 7
    %v1381 = vsub.s32 %v1378, %v1380
    %v1382 = vrot.slane %v1374, %v1381
    %v1384 = vunpack.c.l.s4 1966171168
    %v1385 = vunpack.c.0.s8 %v1384
    %v1386 = vlaneseq
    %v1387 = vshrl.u32 %v1386, 7
    %v1388 = vsub.s32 %v1385, %v1387
    %v1389 = vrot.slane %v1382, %v1388
    %1390 = vrot.lane.b32.xlu0 %v1389, 96
    %v1391 = vpop.permute.xlu0 %1390
    %v1393 = vmul.f32 %v1371, %v1391
    %v1394 = vadd.f32 %v1366, %v1393
    %v1396 = vrot.slane %v1366, 1
    %v1398 = vadd.f32 %v1366, %v1396
    %v1399 = vmul.f32 %v1398, 0.5
    %vm1400 = vcmask 253952
    %1401 = vst.msk [vmem:[#allocation11] sm:$0x1] %vm1400, %v1399
    %1403 = vrot.lane.b32.xlu0 %v1399, 96
    %v1404 = vpop.permute.xlu0 %1403
    %1406 = vst.msk [vmem:[#allocation13] sm:$0x1] %vm1400, %v1404
    %v1407 = vpack.c.bf16 %v1394, %v1394
    %v1408 = vld [vmem:[%s6] sm:$0xf]
    %v1409 = vld [vmem:[%s6 + $0x4] sm:$0xf]
    %v1410 = vld [vmem:[%s6 + $0x8] sm:$0xf]
    %v1411 = vld [vmem:[%s6 + $0xc] sm:$0xf]
    %v1412 = vld [vmem:[%s2 + $0x3] ss:$0 sm:$0xff]
    %v1417 = vunpack.c.l.b16 %v1408
    %v1418 = vunpack.c.l.b16 %v1409
    %v1419 = vunpack.c.l.b16 %v1410
    %v1420 = vunpack.c.l.b16 %v1411
    %v1421 = vpack.c.b16 %v1418, %v1417
    %v1422 = vpack.c.b16 %v1420, %v1419
    %vm1425 = vcmask 261120
    %v1427 = vsel %vm1425, %v1407, 0
    %1429 = vmatprep.subr.bf16.mxu0 0
    %1430 = vmatpush1.bf16.msra.mxu0 %v1421
    %1431 = vmatprep.subr.bf16.mxu0 0
    %1432 = vmatpush1.bf16.msra.mxu0 %v1422
    %1433 = vmatprep.subr.bf16.mxu0 0
    %1434 = vmatpush1.bf16.msra.mxu0 0
    %1435 = vmatprep.subr.bf16.mxu0 0
    %1436 = vmatpush1.bf16.msra.mxu0 0
    %1437 = vmatprep.subr.bf16.mxu0 0
    %1438 = vmatpush1.bf16.msra.mxu0 0
    %1439 = vmatprep.subr.bf16.mxu0 0
    %1440 = vmatpush1.bf16.msra.mxu0 0
    %1441 = vmatprep.subr.bf16.mxu0 0
    %1442 = vmatpush1.bf16.msra.mxu0 0
    %1443 = vmatprep.subr.bf16.mxu0 0
    %1444 = vmatpush1.bf16.msra.mxu0 0
    %1445 = vmatprep.subr.bf16.mxu0 0
    %1446 = vmatpush1.bf16.msra.mxu0 0
    %1447 = vmatprep.subr.bf16.mxu0 0
    %1448 = vmatpush1.bf16.msra.mxu0 0
    %1449 = vmatprep.subr.bf16.mxu0 0
    %1450 = vmatpush1.bf16.msra.mxu0 0
    %1451 = vmatprep.subr.bf16.mxu0 0
    %1452 = vmatpush1.bf16.msra.mxu0 0
    %1453 = vmatprep.subr.bf16.mxu0 0
    %1454 = vmatpush1.bf16.msra.mxu0 0
    %1455 = vmatprep.subr.bf16.mxu0 0
    %1456 = vmatpush1.bf16.msra.mxu0 0
    %1457 = vmatprep.subr.bf16.mxu0 0
    %1458 = vmatpush1.bf16.msra.mxu0 0
    %1459 = vmatprep.subr.bf16.mxu0 0
    %1460 = vmatpush1.bf16.msra.mxu0 0
    %1461 = vmatprep.mubr.bf16.mxu0 0
    %1462 = vmatmul.mubr.bf16.gmra.mrb[0].mxu0 %v1427
    %v1463 = vpop.f32.mrb[0].mxu0
    %v1464 = vadd.f32 %v1412, %v1463
    %v1465 = vpop.f32.mrb[0].mxu0
    %v1466 = vpop.f32.mrb[0].mxu0
    %v1467 = vpop.f32.mrb[0].mxu0
    %1468 = vdwg.mxu0
    %v1469 = vmax.f32 %v1464, 0.0
    %v1470 = vpack.c.bf16 %v1469, %v1469
    %v1471 = vld [vmem:[#allocation7] sm:$0xff]
    %v1472 = vld [vmem:[#allocation7 + $0x8] sm:$0xff]
    %v1473 = vld [vmem:[#allocation7 + $0x10] sm:$0xff]
    %v1474 = vld [vmem:[#allocation7 + $0x18] sm:$0xff]
    %v1475 = vld [vmem:[#allocation7 + $0x20] sm:$0xff]
    %v1476 = vld [vmem:[#allocation7 + $0x28] sm:$0xff]
    %v1477 = vld [vmem:[#allocation7 + $0x30] sm:$0xff]
    %v1478 = vld [vmem:[#allocation7 + $0x38] sm:$0xff]
    %v1479 = vld [vmem:[#allocation7 + $0x40] sm:$0xff]
    %v1480 = vld [vmem:[#allocation7 + $0x48] sm:$0xff]
    %v1481 = vld [vmem:[#allocation7 + $0x50] sm:$0xff]
    %v1482 = vld [vmem:[#allocation7 + $0x58] sm:$0xff]
    %v1483 = vld [vmem:[#allocation7 + $0x60] sm:$0xff]
    %v1484 = vld [vmem:[#allocation7 + $0x68] sm:$0xff]
    %v1485 = vld [vmem:[#allocation7 + $0x70] sm:$0xff]
    %v1486 = vld [vmem:[#allocation7 + $0x78] sm:$0xff]
    %s1487 = scalar_lea.vmem %s2, 4
    %v1488 = vld [vmem:[%s1487] ss:$8 sm:$0x3]
    %v1505 = vunpack.c.l.b16 %v1471
    %v1506 = vunpack.c.h.b16 %v1471
    %v1507 = vunpack.c.l.b16 %v1472
    %v1508 = vunpack.c.h.b16 %v1472
    %v1509 = vunpack.c.l.b16 %v1473
    %v1510 = vunpack.c.h.b16 %v1473
    %v1511 = vunpack.c.l.b16 %v1474
    %v1512 = vunpack.c.h.b16 %v1474
    %v1513 = vunpack.c.l.b16 %v1475
    %v1514 = vunpack.c.h.b16 %v1475
    %v1515 = vunpack.c.l.b16 %v1476
    %v1516 = vunpack.c.h.b16 %v1476
    %v1517 = vunpack.c.l.b16 %v1477
    %v1518 = vunpack.c.h.b16 %v1477
    %v1519 = vunpack.c.l.b16 %v1478
    %v1520 = vunpack.c.h.b16 %v1478
    %v1521 = vunpack.c.l.b16 %v1479
    %v1522 = vunpack.c.h.b16 %v1479
    %v1523 = vunpack.c.l.b16 %v1480
    %v1524 = vunpack.c.h.b16 %v1480
    %v1525 = vunpack.c.l.b16 %v1481
    %v1526 = vunpack.c.h.b16 %v1481
    %v1527 = vunpack.c.l.b16 %v1482
    %v1528 = vunpack.c.h.b16 %v1482
    %v1529 = vunpack.c.l.b16 %v1483
    %v1530 = vunpack.c.h.b16 %v1483
    %v1531 = vunpack.c.l.b16 %v1484
    %v1532 = vunpack.c.h.b16 %v1484
    %v1533 = vunpack.c.l.b16 %v1485
    %v1534 = vunpack.c.h.b16 %v1485
    %v1535 = vunpack.c.l.b16 %v1486
    %v1536 = vunpack.c.h.b16 %v1486
    %v1537 = vpack.c.b16 %v1507, %v1505
    %v1538 = vpack.c.b16 %v1508, %v1506
    %v1539 = vpack.c.b16 %v1511, %v1509
    %v1540 = vpack.c.b16 %v1512, %v1510
    %v1541 = vpack.c.b16 %v1515, %v1513
    %v1542 = vpack.c.b16 %v1516, %v1514
    %v1543 = vpack.c.b16 %v1519, %v1517
    %v1544 = vpack.c.b16 %v1520, %v1518
    %v1545 = vpack.c.b16 %v1523, %v1521
    %v1546 = vpack.c.b16 %v1524, %v1522
    %v1547 = vpack.c.b16 %v1527, %v1525
    %v1548 = vpack.c.b16 %v1528, %v1526
    %v1549 = vpack.c.b16 %v1531, %v1529
    %v1550 = vpack.c.b16 %v1532, %v1530
    %v1551 = vpack.c.b16 %v1535, %v1533
    %v1552 = vpack.c.b16 %v1536, %v1534
    %v1570 = vlaneseq
    %v1571 = vshrl.u32 %v1570, 7
    %v1572 = vsub.s32 0, %v1571
    %v1573 = vrot.slane %v1488, %v1572
    %v1574 = vlaneseq
    %v1575 = vshrl.u32 %v1574, 7
    %v1576 = vsub.s32 1, %v1575
    %v1577 = vrot.slane %v1488, %v1576
    %1580 = vmatprep.subr.bf16.mxu0 %v1538
    %1581 = vmatpush1.bf16.msra.mxu0 %v1537
    %1582 = vmatprep.subr.bf16.mxu0 %v1540
    %1583 = vmatpush1.bf16.msra.mxu0 %v1539
    %1584 = vmatprep.subr.bf16.mxu0 %v1542
    %1585 = vmatpush1.bf16.msra.mxu0 %v1541
    %1586 = vmatprep.subr.bf16.mxu0 %v1544
    %1587 = vmatpush1.bf16.msra.mxu0 %v1543
    %1588 = vmatprep.subr.bf16.mxu0 %v1546
    %1589 = vmatpush1.bf16.msra.mxu0 %v1545
    %1590 = vmatprep.subr.bf16.mxu0 %v1548
    %1591 = vmatpush1.bf16.msra.mxu0 %v1547
    %1592 = vmatprep.subr.bf16.mxu0 %v1550
    %1593 = vmatpush1.bf16.msra.mxu0 %v1549
    %1594 = vmatprep.subr.bf16.mxu0 %v1552
    %1595 = vmatpush1.bf16.msra.mxu0 %v1551
    %1596 = vmatprep.subr.bf16.mxu0 0
    %1597 = vmatpush1.bf16.msra.mxu0 0
    %1598 = vmatprep.subr.bf16.mxu0 0
    %1599 = vmatpush1.bf16.msra.mxu0 0
    %1600 = vmatprep.subr.bf16.mxu0 0
    %1601 = vmatpush1.bf16.msra.mxu0 0
    %1602 = vmatprep.subr.bf16.mxu0 0
    %1603 = vmatpush1.bf16.msra.mxu0 0
    %1604 = vmatprep.subr.bf16.mxu0 0
    %1605 = vmatpush1.bf16.msra.mxu0 0
    %1606 = vmatprep.subr.bf16.mxu0 0
    %1607 = vmatpush1.bf16.msra.mxu0 0
    %1608 = vmatprep.subr.bf16.mxu0 0
    %1609 = vmatpush1.bf16.msra.mxu0 0
    %1610 = vmatprep.subr.bf16.mxu0 0
    %1611 = vmatpush1.bf16.msra.mxu0 0
    %1612 = vmatprep.mubr.bf16.mxu0 0
    %1613 = vmatmul.mubr.bf16.gmra.mrb[0].mxu0 %v1470
    %v1614 = vpop.f32.mrb[0].mxu0
    %v1615 = vadd.f32 %v1573, %v1614
    %v1616 = vpop.f32.mrb[0].mxu0
    %v1617 = vadd.f32 %v1577, %v1616
    %v1618 = vpop.f32.mrb[0].mxu0
    %v1619 = vpop.f32.mrb[0].mxu0
    %1620 = vdwg.mxu0
    %v1621 = vmax.f32 %v1615, 0.0
    %v1622 = vmax.f32 %v1617, 0.0
    %v1623 = vpack.c.bf16 %v1621, %v1621
    %v1624 = vpack.c.bf16 %v1622, %v1622
    %v1625 = vld [vmem:[#allocation8] sm:$0xff]
    %v1626 = vld [vmem:[#allocation8 + $0x8] sm:$0xff]
    %v1627 = vld [vmem:[#allocation8 + $0x10] sm:$0xff]
    %v1628 = vld [vmem:[#allocation8 + $0x18] sm:$0xff]
    %v1629 = vld [vmem:[#allocation8 + $0x20] sm:$0xff]
    %v1630 = vld [vmem:[#allocation8 + $0x28] sm:$0xff]
    %v1631 = vld [vmem:[#allocation8 + $0x30] sm:$0xff]
    %v1632 = vld [vmem:[#allocation8 + $0x38] sm:$0xff]
    %v1633 = vld [vmem:[#allocation8 + $0x40] sm:$0xff]
    %v1634 = vld [vmem:[#allocation8 + $0x48] sm:$0xff]
    %v1635 = vld [vmem:[#allocation8 + $0x50] sm:$0xff]
    %v1636 = vld [vmem:[#allocation8 + $0x58] sm:$0xff]
    %v1637 = vld [vmem:[#allocation8 + $0x60] sm:$0xff]
    %v1638 = vld [vmem:[#allocation8 + $0x68] sm:$0xff]
    %v1639 = vld [vmem:[#allocation8 + $0x70] sm:$0xff]
    %v1640 = vld [vmem:[#allocation8 + $0x78] sm:$0xff]
    %v1641 = vld [vmem:[#allocation8 + $0x80] sm:$0xff]
    %v1642 = vld [vmem:[#allocation8 + $0x88] sm:$0xff]
    %v1643 = vld [vmem:[#allocation8 + $0x90] sm:$0xff]
    %v1644 = vld [vmem:[#allocation8 + $0x98] sm:$0xff]
    %v1645 = vld [vmem:[#allocation8 + $0xa0] sm:$0xff]
    %v1646 = vld [vmem:[#allocation8 + $0xa8] sm:$0xff]
    %v1647 = vld [vmem:[#allocation8 + $0xb0] sm:$0xff]
    %v1648 = vld [vmem:[#allocation8 + $0xb8] sm:$0xff]
    %v1649 = vld [vmem:[#allocation8 + $0xc0] sm:$0xff]
    %v1650 = vld [vmem:[#allocation8 + $0xc8] sm:$0xff]
    %v1651 = vld [vmem:[#allocation8 + $0xd0] sm:$0xff]
    %v1652 = vld [vmem:[#allocation8 + $0xd8] sm:$0xff]
    %v1653 = vld [vmem:[#allocation8 + $0xe0] sm:$0xff]
    %v1654 = vld [vmem:[#allocation8 + $0xe8] sm:$0xff]
    %v1655 = vld [vmem:[#allocation8 + $0xf0] sm:$0xff]
    %v1656 = vld [vmem:[#allocation8 + $0xf8] sm:$0xff]
    %v1657 = vld [vmem:[#allocation8 + $0x100] sm:$0xff]
    %v1658 = vld [vmem:[#allocation8 + $0x108] sm:$0xff]
    %v1659 = vld [vmem:[#allocation8 + $0x110] sm:$0xff]
    %v1660 = vld [vmem:[#allocation8 + $0x118] sm:$0xff]
    %v1661 = vld [vmem:[#allocation8 + $0x120] sm:$0xff]
    %v1662 = vld [vmem:[#allocation8 + $0x128] sm:$0xff]
    %v1663 = vld [vmem:[#allocation8 + $0x130] sm:$0xff]
    %v1664 = vld [vmem:[#allocation8 + $0x138] sm:$0xff]
    %v1665 = vld [vmem:[#allocation8 + $0x140] sm:$0xff]
    %v1666 = vld [vmem:[#allocation8 + $0x148] sm:$0xff]
    %v1667 = vld [vmem:[#allocation8 + $0x150] sm:$0xff]
    %v1668 = vld [vmem:[#allocation8 + $0x158] sm:$0xff]
    %v1669 = vld [vmem:[#allocation8 + $0x160] sm:$0xff]
    %v1670 = vld [vmem:[#allocation8 + $0x168] sm:$0xff]
    %v1671 = vld [vmem:[#allocation8 + $0x170] sm:$0xff]
    %v1672 = vld [vmem:[#allocation8 + $0x178] sm:$0xff]
    %v1673 = vld [vmem:[#allocation8 + $0x180] sm:$0xff]
    %v1674 = vld [vmem:[#allocation8 + $0x188] sm:$0xff]
    %v1675 = vld [vmem:[#allocation8 + $0x190] sm:$0xff]
    %v1676 = vld [vmem:[#allocation8 + $0x198] sm:$0xff]
    %v1677 = vld [vmem:[#allocation8 + $0x1a0] sm:$0xff]
    %v1678 = vld [vmem:[#allocation8 + $0x1a8] sm:$0xff]
    %v1679 = vld [vmem:[#allocation8 + $0x1b0] sm:$0xff]
    %v1680 = vld [vmem:[#allocation8 + $0x1b8] sm:$0xff]
    %v1681 = vld [vmem:[#allocation8 + $0x1c0] sm:$0xff]
    %v1682 = vld [vmem:[#allocation8 + $0x1c8] sm:$0xff]
    %v1683 = vld [vmem:[#allocation8 + $0x1d0] sm:$0xff]
    %v1684 = vld [vmem:[#allocation8 + $0x1d8] sm:$0xff]
    %v1685 = vld [vmem:[#allocation8 + $0x1e0] sm:$0xff]
    %v1686 = vld [vmem:[#allocation8 + $0x1e8] sm:$0xff]
    %v1687 = vld [vmem:[#allocation8 + $0x1f0] sm:$0xff]
    %v1688 = vld [vmem:[#allocation8 + $0x1f8] sm:$0xff]
    %v1689 = vld [vmem:[#allocation8 + $0x200] sm:$0xff]
    %v1690 = vld [vmem:[#allocation8 + $0x208] sm:$0xff]
    %v1691 = vld [vmem:[#allocation8 + $0x210] sm:$0xff]
    %v1692 = vld [vmem:[#allocation8 + $0x218] sm:$0xff]
    %v1693 = vld [vmem:[#allocation8 + $0x220] sm:$0xff]
    %v1694 = vld [vmem:[#allocation8 + $0x228] sm:$0xff]
    %v1695 = vld [vmem:[#allocation8 + $0x230] sm:$0xff]
    %v1696 = vld [vmem:[#allocation8 + $0x238] sm:$0xff]
    %v1697 = vld [vmem:[#allocation8 + $0x240] sm:$0xff]
    %v1698 = vld [vmem:[#allocation8 + $0x248] sm:$0xff]
    %v1699 = vld [vmem:[#allocation8 + $0x250] sm:$0xff]
    %v1700 = vld [vmem:[#allocation8 + $0x258] sm:$0xff]
    %v1701 = vld [vmem:[#allocation8 + $0x260] sm:$0xff]
    %v1702 = vld [vmem:[#allocation8 + $0x268] sm:$0xff]
    %v1703 = vld [vmem:[#allocation8 + $0x270] sm:$0xff]
    %v1704 = vld [vmem:[#allocation8 + $0x278] sm:$0xff]
    %v1705 = vld [vmem:[#allocation8 + $0x280] sm:$0xff]
    %v1706 = vld [vmem:[#allocation8 + $0x288] sm:$0xff]
    %v1707 = vld [vmem:[#allocation8 + $0x290] sm:$0xff]
    %v1708 = vld [vmem:[#allocation8 + $0x298] sm:$0xff]
    %v1709 = vld [vmem:[#allocation8 + $0x2a0] sm:$0xff]
    %v1710 = vld [vmem:[#allocation8 + $0x2a8] sm:$0xff]
    %v1711 = vld [vmem:[#allocation8 + $0x2b0] sm:$0xff]
    %v1712 = vld [vmem:[#allocation8 + $0x2b8] sm:$0xff]
    %v1713 = vld [vmem:[#allocation8 + $0x2c0] sm:$0xff]
    %v1714 = vld [vmem:[#allocation8 + $0x2c8] sm:$0xff]
    %v1715 = vld [vmem:[#allocation8 + $0x2d0] sm:$0xff]
    %v1716 = vld [vmem:[#allocation8 + $0x2d8] sm:$0xff]
    %v1717 = vld [vmem:[#allocation8 + $0x2e0] sm:$0xff]
    %v1718 = vld [vmem:[#allocation8 + $0x2e8] sm:$0xff]
    %v1719 = vld [vmem:[#allocation8 + $0x2f0] sm:$0xff]
    %v1720 = vld [vmem:[#allocation8 + $0x2f8] sm:$0xff]
    %v1721 = vld [vmem:[#allocation8 + $0x300] sm:$0xff]
    %v1722 = vld [vmem:[#allocation8 + $0x308] sm:$0xff]
    %v1723 = vld [vmem:[#allocation8 + $0x310] sm:$0xff]
    %v1724 = vld [vmem:[#allocation8 + $0x318] sm:$0xff]
    %v1725 = vld [vmem:[#allocation8 + $0x320] sm:$0xff]
    %v1726 = vld [vmem:[#allocation8 + $0x328] sm:$0xff]
    %v1727 = vld [vmem:[#allocation8 + $0x330] sm:$0xff]
    %v1728 = vld [vmem:[#allocation8 + $0x338] sm:$0xff]
    %v1729 = vld [vmem:[#allocation8 + $0x340] sm:$0xff]
    %v1730 = vld [vmem:[#allocation8 + $0x348] sm:$0xff]
    %v1731 = vld [vmem:[#allocation8 + $0x350] sm:$0xff]
    %v1732 = vld [vmem:[#allocation8 + $0x358] sm:$0xff]
    %v1733 = vld [vmem:[#allocation8 + $0x360] sm:$0xff]
    %v1734 = vld [vmem:[#allocation8 + $0x368] sm:$0xff]
    %v1735 = vld [vmem:[#allocation8 + $0x370] sm:$0xff]
    %v1736 = vld [vmem:[#allocation8 + $0x378] sm:$0xff]
    %v1737 = vld [vmem:[#allocation8 + $0x380] sm:$0xff]
    %v1738 = vld [vmem:[#allocation8 + $0x388] sm:$0xff]
    %v1739 = vld [vmem:[#allocation8 + $0x390] sm:$0xff]
    %v1740 = vld [vmem:[#allocation8 + $0x398] sm:$0xff]
    %v1741 = vld [vmem:[#allocation8 + $0x3a0] sm:$0xff]
    %v1742 = vld [vmem:[#allocation8 + $0x3a8] sm:$0xff]
    %v1743 = vld [vmem:[#allocation8 + $0x3b0] sm:$0xff]
    %v1744 = vld [vmem:[#allocation8 + $0x3b8] sm:$0xff]
    %v1745 = vld [vmem:[#allocation8 + $0x3c0] sm:$0xff]
    %v1746 = vld [vmem:[#allocation8 + $0x3c8] sm:$0xff]
    %v1747 = vld [vmem:[#allocation8 + $0x3d0] sm:$0xff]
    %v1748 = vld [vmem:[#allocation8 + $0x3d8] sm:$0xff]
    %v1749 = vld [vmem:[#allocation8 + $0x3e0] sm:$0xff]
    %v1750 = vld [vmem:[#allocation8 + $0x3e8] sm:$0xff]
    %v1751 = vld [vmem:[#allocation8 + $0x3f0] sm:$0xff]
    %v1752 = vld [vmem:[#allocation8 + $0x3f8] sm:$0xff]
    %s1753 = scalar_lea.vmem %s2, 5
    %v1754 = vld [vmem:[%s1753] ss:$8 sm:$0xf]
    %v1755 = vld [vmem:[%s1753] ss:$8 sm:$0xf0]
    %v1756 = vor.u32 %v1754, %v1755
    %v1885 = vunpack.c.l.b16 %v1625
    %v1886 = vunpack.c.h.b16 %v1625
    %v1887 = vunpack.c.l.b16 %v1626
    %v1888 = vunpack.c.h.b16 %v1626
    %v1889 = vunpack.c.l.b16 %v1627
    %v1890 = vunpack.c.h.b16 %v1627
    %v1891 = vunpack.c.l.b16 %v1628
    %v1892 = vunpack.c.h.b16 %v1628
    %v1893 = vunpack.c.l.b16 %v1629
    %v1894 = vunpack.c.h.b16 %v1629
    %v1895 = vunpack.c.l.b16 %v1630
    %v1896 = vunpack.c.h.b16 %v1630
    %v1897 = vunpack.c.l.b16 %v1631
    %v1898 = vunpack.c.h.b16 %v1631
    %v1899 = vunpack.c.l.b16 %v1632
    %v1900 = vunpack.c.h.b16 %v1632
    %v1901 = vunpack.c.l.b16 %v1633
    %v1902 = vunpack.c.h.b16 %v1633
    %v1903 = vunpack.c.l.b16 %v1634
    %v1904 = vunpack.c.h.b16 %v1634
    %v1905 = vunpack.c.l.b16 %v1635
    %v1906 = vunpack.c.h.b16 %v1635
    %v1907 = vunpack.c.l.b16 %v1636
    %v1908 = vunpack.c.h.b16 %v1636
    %v1909 = vunpack.c.l.b16 %v1637
    %v1910 = vunpack.c.h.b16 %v1637
    %v1911 = vunpack.c.l.b16 %v1638
    %v1912 = vunpack.c.h.b16 %v1638
    %v1913 = vunpack.c.l.b16 %v1639
    %v1914 = vunpack.c.h.b16 %v1639
    %v1915 = vunpack.c.l.b16 %v1640
    %v1916 = vunpack.c.h.b16 %v1640
    %v1917 = vunpack.c.l.b16 %v1641
    %v1918 = vunpack.c.h.b16 %v1641
    %v1919 = vunpack.c.l.b16 %v1642
    %v1920 = vunpack.c.h.b16 %v1642
    %v1921 = vunpack.c.l.b16 %v1643
    %v1922 = vunpack.c.h.b16 %v1643
    %v1923 = vunpack.c.l.b16 %v1644
    %v1924 = vunpack.c.h.b16 %v1644
    %v1925 = vunpack.c.l.b16 %v1645
    %v1926 = vunpack.c.h.b16 %v1645
    %v1927 = vunpack.c.l.b16 %v1646
    %v1928 = vunpack.c.h.b16 %v1646
    %v1929 = vunpack.c.l.b16 %v1647
    %v1930 = vunpack.c.h.b16 %v1647
    %v1931 = vunpack.c.l.b16 %v1648
    %v1932 = vunpack.c.h.b16 %v1648
    %v1933 = vunpack.c.l.b16 %v1649
    %v1934 = vunpack.c.h.b16 %v1649
    %v1935 = vunpack.c.l.b16 %v1650
    %v1936 = vunpack.c.h.b16 %v1650
    %v1937 = vunpack.c.l.b16 %v1651
    %v1938 = vunpack.c.h.b16 %v1651
    %v1939 = vunpack.c.l.b16 %v1652
    %v1940 = vunpack.c.h.b16 %v1652
    %v1941 = vunpack.c.l.b16 %v1653
    %v1942 = vunpack.c.h.b16 %v1653
    %v1943 = vunpack.c.l.b16 %v1654
    %v1944 = vunpack.c.h.b16 %v1654
    %v1945 = vunpack.c.l.b16 %v1655
    %v1946 = vunpack.c.h.b16 %v1655
    %v1947 = vunpack.c.l.b16 %v1656
    %v1948 = vunpack.c.h.b16 %v1656
    %v1949 = vunpack.c.l.b16 %v1657
    %v1950 = vunpack.c.h.b16 %v1657
    %v1951 = vunpack.c.l.b16 %v1658
    %v1952 = vunpack.c.h.b16 %v1658
    %v1953 = vunpack.c.l.b16 %v1659
    %v1954 = vunpack.c.h.b16 %v1659
    %v1955 = vunpack.c.l.b16 %v1660
    %v1956 = vunpack.c.h.b16 %v1660
    %v1957 = vunpack.c.l.b16 %v1661
    %v1958 = vunpack.c.h.b16 %v1661
    %v1959 = vunpack.c.l.b16 %v1662
    %v1960 = vunpack.c.h.b16 %v1662
    %v1961 = vunpack.c.l.b16 %v1663
    %v1962 = vunpack.c.h.b16 %v1663
    %v1963 = vunpack.c.l.b16 %v1664
    %v1964 = vunpack.c.h.b16 %v1664
    %v1965 = vunpack.c.l.b16 %v1665
    %v1966 = vunpack.c.h.b16 %v1665
    %v1967 = vunpack.c.l.b16 %v1666
    %v1968 = vunpack.c.h.b16 %v1666
    %v1969 = vunpack.c.l.b16 %v1667
    %v1970 = vunpack.c.h.b16 %v1667
    %v1971 = vunpack.c.l.b16 %v1668
    %v1972 = vunpack.c.h.b16 %v1668
    %v1973 = vunpack.c.l.b16 %v1669
    %v1974 = vunpack.c.h.b16 %v1669
    %v1975 = vunpack.c.l.b16 %v1670
    %v1976 = vunpack.c.h.b16 %v1670
    %v1977 = vunpack.c.l.b16 %v1671
    %v1978 = vunpack.c.h.b16 %v1671
    %v1979 = vunpack.c.l.b16 %v1672
    %v1980 = vunpack.c.h.b16 %v1672
    %v1981 = vunpack.c.l.b16 %v1673
    %v1982 = vunpack.c.h.b16 %v1673
    %v1983 = vunpack.c.l.b16 %v1674
    %v1984 = vunpack.c.h.b16 %v1674
    %v1985 = vunpack.c.l.b16 %v1675
    %v1986 = vunpack.c.h.b16 %v1675
    %v1987 = vunpack.c.l.b16 %v1676
    %v1988 = vunpack.c.h.b16 %v1676
    %v1989 = vunpack.c.l.b16 %v1677
    %v1990 = vunpack.c.h.b16 %v1677
    %v1991 = vunpack.c.l.b16 %v1678
    %v1992 = vunpack.c.h.b16 %v1678
    %v1993 = vunpack.c.l.b16 %v1679
    %v1994 = vunpack.c.h.b16 %v1679
    %v1995 = vunpack.c.l.b16 %v1680
    %v1996 = vunpack.c.h.b16 %v1680
    %v1997 = vunpack.c.l.b16 %v1681
    %v1998 = vunpack.c.h.b16 %v1681
    %v1999 = vunpack.c.l.b16 %v1682
    %v2000 = vunpack.c.h.b16 %v1682
    %v2001 = vunpack.c.l.b16 %v1683
    %v2002 = vunpack.c.h.b16 %v1683
    %v2003 = vunpack.c.l.b16 %v1684
    %v2004 = vunpack.c.h.b16 %v1684
    %v2005 = vunpack.c.l.b16 %v1685
    %v2006 = vunpack.c.h.b16 %v1685
    %v2007 = vunpack.c.l.b16 %v1686
    %v2008 = vunpack.c.h.b16 %v1686
    %v2009 = vunpack.c.l.b16 %v1687
    %v2010 = vunpack.c.h.b16 %v1687
    %v2011 = vunpack.c.l.b16 %v1688
    %v2012 = vunpack.c.h.b16 %v1688
    %v2013 = vunpack.c.l.b16 %v1689
    %v2014 = vunpack.c.h.b16 %v1689
    %v2015 = vunpack.c.l.b16 %v1690
    %v2016 = vunpack.c.h.b16 %v1690
    %v2017 = vunpack.c.l.b16 %v1691
    %v2018 = vunpack.c.h.b16 %v1691
    %v2019 = vunpack.c.l.b16 %v1692
    %v2020 = vunpack.c.h.b16 %v1692
    %v2021 = vunpack.c.l.b16 %v1693
    %v2022 = vunpack.c.h.b16 %v1693
    %v2023 = vunpack.c.l.b16 %v1694
    %v2024 = vunpack.c.h.b16 %v1694
    %v2025 = vunpack.c.l.b16 %v1695
    %v2026 = vunpack.c.h.b16 %v1695
    %v2027 = vunpack.c.l.b16 %v1696
    %v2028 = vunpack.c.h.b16 %v1696
    %v2029 = vunpack.c.l.b16 %v1697
    %v2030 = vunpack.c.h.b16 %v1697
    %v2031 = vunpack.c.l.b16 %v1698
    %v2032 = vunpack.c.h.b16 %v1698
    %v2033 = vunpack.c.l.b16 %v1699
    %v2034 = vunpack.c.h.b16 %v1699
    %v2035 = vunpack.c.l.b16 %v1700
    %v2036 = vunpack.c.h.b16 %v1700
    %v2037 = vunpack.c.l.b16 %v1701
    %v2038 = vunpack.c.h.b16 %v1701
    %v2039 = vunpack.c.l.b16 %v1702
    %v2040 = vunpack.c.h.b16 %v1702
    %v2041 = vunpack.c.l.b16 %v1703
    %v2042 = vunpack.c.h.b16 %v1703
    %v2043 = vunpack.c.l.b16 %v1704
    %v2044 = vunpack.c.h.b16 %v1704
    %v2045 = vunpack.c.l.b16 %v1705
    %v2046 = vunpack.c.h.b16 %v1705
    %v2047 = vunpack.c.l.b16 %v1706
    %v2048 = vunpack.c.h.b16 %v1706
    %v2049 = vunpack.c.l.b16 %v1707
    %v2050 = vunpack.c.h.b16 %v1707
    %v2051 = vunpack.c.l.b16 %v1708
    %v2052 = vunpack.c.h.b16 %v1708
    %v2053 = vunpack.c.l.b16 %v1709
    %v2054 = vunpack.c.h.b16 %v1709
    %v2055 = vunpack.c.l.b16 %v1710
    %v2056 = vunpack.c.h.b16 %v1710
    %v2057 = vunpack.c.l.b16 %v1711
    %v2058 = vunpack.c.h.b16 %v1711
    %v2059 = vunpack.c.l.b16 %v1712
    %v2060 = vunpack.c.h.b16 %v1712
    %v2061 = vunpack.c.l.b16 %v1713
    %v2062 = vunpack.c.h.b16 %v1713
    %v2063 = vunpack.c.l.b16 %v1714
    %v2064 = vunpack.c.h.b16 %v1714
    %v2065 = vunpack.c.l.b16 %v1715
    %v2066 = vunpack.c.h.b16 %v1715
    %v2067 = vunpack.c.l.b16 %v1716
    %v2068 = vunpack.c.h.b16 %v1716
    %v2069 = vunpack.c.l.b16 %v1717
    %v2070 = vunpack.c.h.b16 %v1717
    %v2071 = vunpack.c.l.b16 %v1718
    %v2072 = vunpack.c.h.b16 %v1718
    %v2073 = vunpack.c.l.b16 %v1719
    %v2074 = vunpack.c.h.b16 %v1719
    %v2075 = vunpack.c.l.b16 %v1720
    %v2076 = vunpack.c.h.b16 %v1720
    %v2077 = vunpack.c.l.b16 %v1721
    %v2078 = vunpack.c.h.b16 %v1721
    %v2079 = vunpack.c.l.b16 %v1722
    %v2080 = vunpack.c.h.b16 %v1722
    %v2081 = vunpack.c.l.b16 %v1723
    %v2082 = vunpack.c.h.b16 %v1723
    %v2083 = vunpack.c.l.b16 %v1724
    %v2084 = vunpack.c.h.b16 %v1724
    %v2085 = vunpack.c.l.b16 %v1725
    %v2086 = vunpack.c.h.b16 %v1725
    %v2087 = vunpack.c.l.b16 %v1726
    %v2088 = vunpack.c.h.b16 %v1726
    %v2089 = vunpack.c.l.b16 %v1727
    %v2090 = vunpack.c.h.b16 %v1727
    %v2091 = vunpack.c.l.b16 %v1728
    %v2092 = vunpack.c.h.b16 %v1728
    %v2093 = vunpack.c.l.b16 %v1729
    %v2094 = vunpack.c.h.b16 %v1729
    %v2095 = vunpack.c.l.b16 %v1730
    %v2096 = vunpack.c.h.b16 %v1730
    %v2097 = vunpack.c.l.b16 %v1731
    %v2098 = vunpack.c.h.b16 %v1731
    %v2099 = vunpack.c.l.b16 %v1732
    %v2100 = vunpack.c.h.b16 %v1732
    %v2101 = vunpack.c.l.b16 %v1733
    %v2102 = vunpack.c.h.b16 %v1733
    %v2103 = vunpack.c.l.b16 %v1734
    %v2104 = vunpack.c.h.b16 %v1734
    %v2105 = vunpack.c.l.b16 %v1735
    %v2106 = vunpack.c.h.b16 %v1735
    %v2107 = vunpack.c.l.b16 %v1736
    %v2108 = vunpack.c.h.b16 %v1736
    %v2109 = vunpack.c.l.b16 %v1737
    %v2110 = vunpack.c.h.b16 %v1737
    %v2111 = vunpack.c.l.b16 %v1738
    %v2112 = vunpack.c.h.b16 %v1738
    %v2113 = vunpack.c.l.b16 %v1739
    %v2114 = vunpack.c.h.b16 %v1739
    %v2115 = vunpack.c.l.b16 %v1740
    %v2116 = vunpack.c.h.b16 %v1740
    %v2117 = vunpack.c.l.b16 %v1741
    %v2118 = vunpack.c.h.b16 %v1741
    %v2119 = vunpack.c.l.b16 %v1742
    %v2120 = vunpack.c.h.b16 %v1742
    %v2121 = vunpack.c.l.b16 %v1743
    %v2122 = vunpack.c.h.b16 %v1743
    %v2123 = vunpack.c.l.b16 %v1744
    %v2124 = vunpack.c.h.b16 %v1744
    %v2125 = vunpack.c.l.b16 %v1745
    %v2126 = vunpack.c.h.b16 %v1745
    %v2127 = vunpack.c.l.b16 %v1746
    %v2128 = vunpack.c.h.b16 %v1746
    %v2129 = vunpack.c.l.b16 %v1747
    %v2130 = vunpack.c.h.b16 %v1747
    %v2131 = vunpack.c.l.b16 %v1748
    %v2132 = vunpack.c.h.b16 %v1748
    %v2133 = vunpack.c.l.b16 %v1749
    %v2134 = vunpack.c.h.b16 %v1749
    %v2135 = vunpack.c.l.b16 %v1750
    %v2136 = vunpack.c.h.b16 %v1750
    %v2137 = vunpack.c.l.b16 %v1751
    %v2138 = vunpack.c.h.b16 %v1751
    %v2139 = vunpack.c.l.b16 %v1752
    %v2140 = vunpack.c.h.b16 %v1752
    %v2141 = vpack.c.b16 %v1893, %v1885
    %v2142 = vpack.c.b16 %v1894, %v1886
    %v2143 = vpack.c.b16 %v1895, %v1887
    %v2144 = vpack.c.b16 %v1896, %v1888
    %v2145 = vpack.c.b16 %v1897, %v1889
    %v2146 = vpack.c.b16 %v1898, %v1890
    %v2147 = vpack.c.b16 %v1899, %v1891
    %v2148 = vpack.c.b16 %v1900, %v1892
    %v2149 = vpack.c.b16 %v1909, %v1901
    %v2150 = vpack.c.b16 %v1910, %v1902
    %v2151 = vpack.c.b16 %v1911, %v1903
    %v2152 = vpack.c.b16 %v1912, %v1904
    %v2153 = vpack.c.b16 %v1913, %v1905
    %v2154 = vpack.c.b16 %v1914, %v1906
    %v2155 = vpack.c.b16 %v1915, %v1907
    %v2156 = vpack.c.b16 %v1916, %v1908
    %v2157 = vpack.c.b16 %v1925, %v1917
    %v2158 = vpack.c.b16 %v1926, %v1918
    %v2159 = vpack.c.b16 %v1927, %v1919
    %v2160 = vpack.c.b16 %v1928, %v1920
    %v2161 = vpack.c.b16 %v1929, %v1921
    %v2162 = vpack.c.b16 %v1930, %v1922
    %v2163 = vpack.c.b16 %v1931, %v1923
    %v2164 = vpack.c.b16 %v1932, %v1924
    %v2165 = vpack.c.b16 %v1941, %v1933
    %v2166 = vpack.c.b16 %v1942, %v1934
    %v2167 = vpack.c.b16 %v1943, %v1935
    %v2168 = vpack.c.b16 %v1944, %v1936
    %v2169 = vpack.c.b16 %v1945, %v1937
    %v2170 = vpack.c.b16 %v1946, %v1938
    %v2171 = vpack.c.b16 %v1947, %v1939
    %v2172 = vpack.c.b16 %v1948, %v1940
    %v2173 = vpack.c.b16 %v1957, %v1949
    %v2174 = vpack.c.b16 %v1958, %v1950
    %v2175 = vpack.c.b16 %v1959, %v1951
    %v2176 = vpack.c.b16 %v1960, %v1952
    %v2177 = vpack.c.b16 %v1961, %v1953
    %v2178 = vpack.c.b16 %v1962, %v1954
    %v2179 = vpack.c.b16 %v1963, %v1955
    %v2180 = vpack.c.b16 %v1964, %v1956
    %v2181 = vpack.c.b16 %v1973, %v1965
    %v2182 = vpack.c.b16 %v1974, %v1966
    %v2183 = vpack.c.b16 %v1975, %v1967
    %v2184 = vpack.c.b16 %v1976, %v1968
    %v2185 = vpack.c.b16 %v1977, %v1969
    %v2186 = vpack.c.b16 %v1978, %v1970
    %v2187 = vpack.c.b16 %v1979, %v1971
    %v2188 = vpack.c.b16 %v1980, %v1972
    %v2189 = vpack.c.b16 %v1989, %v1981
    %v2190 = vpack.c.b16 %v1990, %v1982
    %v2191 = vpack.c.b16 %v1991, %v1983
    %v2192 = vpack.c.b16 %v1992, %v1984
    %v2193 = vpack.c.b16 %v1993, %v1985
    %v2194 = vpack.c.b16 %v1994, %v1986
    %v2195 = vpack.c.b16 %v1995, %v1987
    %v2196 = vpack.c.b16 %v1996, %v1988
    %v2197 = vpack.c.b16 %v2005, %v1997
    %v2198 = vpack.c.b16 %v2006, %v1998
    %v2199 = vpack.c.b16 %v2007, %v1999
    %v2200 = vpack.c.b16 %v2008, %v2000
    %v2201 = vpack.c.b16 %v2009, %v2001
    %v2202 = vpack.c.b16 %v2010, %v2002
    %v2203 = vpack.c.b16 %v2011, %v2003
    %v2204 = vpack.c.b16 %v2012, %v2004
    %v2205 = vpack.c.b16 %v2021, %v2013
    %v2206 = vpack.c.b16 %v2022, %v2014
    %v2207 = vpack.c.b16 %v2023, %v2015
    %v2208 = vpack.c.b16 %v2024, %v2016
    %v2209 = vpack.c.b16 %v2025, %v2017
    %v2210 = vpack.c.b16 %v2026, %v2018
    %v2211 = vpack.c.b16 %v2027, %v2019
    %v2212 = vpack.c.b16 %v2028, %v2020
    %v2213 = vpack.c.b16 %v2037, %v2029
    %v2214 = vpack.c.b16 %v2038, %v2030
    %v2215 = vpack.c.b16 %v2039, %v2031
    %v2216 = vpack.c.b16 %v2040, %v2032
    %v2217 = vpack.c.b16 %v2041, %v2033
    %v2218 = vpack.c.b16 %v2042, %v2034
    %v2219 = vpack.c.b16 %v2043, %v2035
    %v2220 = vpack.c.b16 %v2044, %v2036
    %v2221 = vpack.c.b16 %v2053, %v2045
    %v2222 = vpack.c.b16 %v2054, %v2046
    %v2223 = vpack.c.b16 %v2055, %v2047
    %v2224 = vpack.c.b16 %v2056, %v2048
    %v2225 = vpack.c.b16 %v2057, %v2049
    %v2226 = vpack.c.b16 %v2058, %v2050
    %v2227 = vpack.c.b16 %v2059, %v2051
    %v2228 = vpack.c.b16 %v2060, %v2052
    %v2229 = vpack.c.b16 %v2069, %v2061
    %v2230 = vpack.c.b16 %v2070, %v2062
    %v2231 = vpack.c.b16 %v2071, %v2063
    %v2232 = vpack.c.b16 %v2072, %v2064
    %v2233 = vpack.c.b16 %v2073, %v2065
    %v2234 = vpack.c.b16 %v2074, %v2066
    %v2235 = vpack.c.b16 %v2075, %v2067
    %v2236 = vpack.c.b16 %v2076, %v2068
    %v2237 = vpack.c.b16 %v2085, %v2077
    %v2238 = vpack.c.b16 %v2086, %v2078
    %v2239 = vpack.c.b16 %v2087, %v2079
    %v2240 = vpack.c.b16 %v2088, %v2080
    %v2241 = vpack.c.b16 %v2089, %v2081
    %v2242 = vpack.c.b16 %v2090, %v2082
    %v2243 = vpack.c.b16 %v2091, %v2083
    %v2244 = vpack.c.b16 %v2092, %v2084
    %v2245 = vpack.c.b16 %v2101, %v2093
    %v2246 = vpack.c.b16 %v2102, %v2094
    %v2247 = vpack.c.b16 %v2103, %v2095
    %v2248 = vpack.c.b16 %v2104, %v2096
    %v2249 = vpack.c.b16 %v2105, %v2097
    %v2250 = vpack.c.b16 %v2106, %v2098
    %v2251 = vpack.c.b16 %v2107, %v2099
    %v2252 = vpack.c.b16 %v2108, %v2100
    %v2253 = vpack.c.b16 %v2117, %v2109
    %v2254 = vpack.c.b16 %v2118, %v2110
    %v2255 = vpack.c.b16 %v2119, %v2111
    %v2256 = vpack.c.b16 %v2120, %v2112
    %v2257 = vpack.c.b16 %v2121, %v2113
    %v2258 = vpack.c.b16 %v2122, %v2114
    %v2259 = vpack.c.b16 %v2123, %v2115
    %v2260 = vpack.c.b16 %v2124, %v2116
    %v2261 = vpack.c.b16 %v2133, %v2125
    %v2262 = vpack.c.b16 %v2134, %v2126
    %v2263 = vpack.c.b16 %v2135, %v2127
    %v2264 = vpack.c.b16 %v2136, %v2128
    %v2265 = vpack.c.b16 %v2137, %v2129
    %v2266 = vpack.c.b16 %v2138, %v2130
    %v2267 = vpack.c.b16 %v2139, %v2131
    %v2268 = vpack.c.b16 %v2140, %v2132
    %v2398 = vlaneseq
    %v2399 = vshrl.u32 %v2398, 7
    %v2400 = vsub.s32 0, %v2399
    %v2401 = vrot.slane %v1756, %v2400
    %v2402 = vlaneseq
    %v2403 = vshrl.u32 %v2402, 7
    %v2404 = vsub.s32 1, %v2403
    %v2405 = vrot.slane %v1756, %v2404
    %v2406 = vlaneseq
    %v2407 = vshrl.u32 %v2406, 7
    %v2408 = vsub.s32 2, %v2407
    %v2409 = vrot.slane %v1756, %v2408
    %v2410 = vlaneseq
    %v2411 = vshrl.u32 %v2410, 7
    %v2412 = vsub.s32 3, %v2411
    %v2413 = vrot.slane %v1756, %v2412
    %v2414 = vlaneseq
    %v2415 = vshrl.u32 %v2414, 7
    %v2416 = vsub.s32 4, %v2415
    %v2417 = vrot.slane %v1756, %v2416
    %v2418 = vlaneseq
    %v2419 = vshrl.u32 %v2418, 7
    %v2420 = vsub.s32 5, %v2419
    %v2421 = vrot.slane %v1756, %v2420
    %v2422 = vlaneseq
    %v2423 = vshrl.u32 %v2422, 7
    %v2424 = vsub.s32 6, %v2423
    %v2425 = vrot.slane %v1756, %v2424
    %v2426 = vlaneseq
    %v2427 = vshrl.u32 %v2426, 7
    %v2428 = vsub.s32 7, %v2427
    %v2429 = vrot.slane %v1756, %v2428
    %2438 = vmatprep.subr.bf16.mxu0 %v2142
    %2439 = vmatpush1.bf16.msra.mxu0 %v2141
    %2440 = vmatprep.subr.bf16.mxu0 %v2150
    %2441 = vmatpush1.bf16.msra.mxu0 %v2149
    %2442 = vmatprep.subr.bf16.mxu0 %v2158
    %2443 = vmatpush1.bf16.msra.mxu0 %v2157
    %2444 = vmatprep.subr.bf16.mxu0 %v2166
    %2445 = vmatpush1.bf16.msra.mxu0 %v2165
    %2446 = vmatprep.subr.bf16.mxu0 %v2174
    %2447 = vmatpush1.bf16.msra.mxu0 %v2173
    %2448 = vmatprep.subr.bf16.mxu0 %v2182
    %2449 = vmatpush1.bf16.msra.mxu0 %v2181
    %2450 = vmatprep.subr.bf16.mxu0 %v2190
    %2451 = vmatpush1.bf16.msra.mxu0 %v2189
    %2452 = vmatprep.subr.bf16.mxu0 %v2198
    %2453 = vmatpush1.bf16.msra.mxu0 %v2197
    %2454 = vmatprep.subr.bf16.mxu0 %v2206
    %2455 = vmatpush1.bf16.msra.mxu0 %v2205
    %2456 = vmatprep.subr.bf16.mxu0 %v2214
    %2457 = vmatpush1.bf16.msra.mxu0 %v2213
    %2458 = vmatprep.subr.bf16.mxu0 %v2222
    %2459 = vmatpush1.bf16.msra.mxu0 %v2221
    %2460 = vmatprep.subr.bf16.mxu0 %v2230
    %2461 = vmatpush1.bf16.msra.mxu0 %v2229
    %2462 = vmatprep.subr.bf16.mxu0 %v2238
    %2463 = vmatpush1.bf16.msra.mxu0 %v2237
    %2464 = vmatprep.subr.bf16.mxu0 %v2246
    %2465 = vmatpush1.bf16.msra.mxu0 %v2245
    %2466 = vmatprep.subr.bf16.mxu0 %v2254
    %2467 = vmatpush1.bf16.msra.mxu0 %v2253
    %2468 = vmatprep.subr.bf16.mxu0 %v2262
    %2469 = vmatpush1.bf16.msra.mxu0 %v2261
    %2470 = vmatprep.mubr.bf16.mxu0 %v1624
    %2471 = vmatmul.mubr.bf16.gmra.mrb[0].mxu0 %v1623
    %v2472 = vpop.f32.mrb[0].mxu0
    %v2473 = vadd.f32 %v2401, %v2472
    %v2474 = vpop.f32.mrb[0].mxu0
    %v2475 = vadd.f32 %v2405, %v2474
    %v2476 = vpop.f32.mrb[0].mxu0
    %v2477 = vpop.f32.mrb[0].mxu0
    %2478 = vdwg.mxu0
    %2479 = vmatprep.subr.bf16.mxu0 %v2144
    %2480 = vmatpush1.bf16.msra.mxu0 %v2143
    %2481 = vmatprep.subr.bf16.mxu0 %v2152
    %2482 = vmatpush1.bf16.msra.mxu0 %v2151
    %2483 = vmatprep.subr.bf16.mxu0 %v2160
    %2484 = vmatpush1.bf16.msra.mxu0 %v2159
    %2485 = vmatprep.subr.bf16.mxu0 %v2168
    %2486 = vmatpush1.bf16.msra.mxu0 %v2167
    %2487 = vmatprep.subr.bf16.mxu0 %v2176
    %2488 = vmatpush1.bf16.msra.mxu0 %v2175
    %2489 = vmatprep.subr.bf16.mxu0 %v2184
    %2490 = vmatpush1.bf16.msra.mxu0 %v2183
    %2491 = vmatprep.subr.bf16.mxu0 %v2192
    %2492 = vmatpush1.bf16.msra.mxu0 %v2191
    %2493 = vmatprep.subr.bf16.mxu0 %v2200
    %2494 = vmatpush1.bf16.msra.mxu0 %v2199
    %2495 = vmatprep.subr.bf16.mxu0 %v2208
    %2496 = vmatpush1.bf16.msra.mxu0 %v2207
    %2497 = vmatprep.subr.bf16.mxu0 %v2216
    %2498 = vmatpush1.bf16.msra.mxu0 %v2215
    %2499 = vmatprep.subr.bf16.mxu0 %v2224
    %2500 = vmatpush1.bf16.msra.mxu0 %v2223
    %2501 = vmatprep.subr.bf16.mxu0 %v2232
    %2502 = vmatpush1.bf16.msra.mxu0 %v2231
    %2503 = vmatprep.subr.bf16.mxu0 %v2240
    %2504 = vmatpush1.bf16.msra.mxu0 %v2239
    %2505 = vmatprep.subr.bf16.mxu0 %v2248
    %2506 = vmatpush1.bf16.msra.mxu0 %v2247
    %2507 = vmatprep.subr.bf16.mxu0 %v2256
    %2508 = vmatpush1.bf16.msra.mxu0 %v2255
    %2509 = vmatprep.subr.bf16.mxu0 %v2264
    %2510 = vmatpush1.bf16.msra.mxu0 %v2263
    %2511 = vmatprep.mubr.bf16.mxu0 %v1624
    %2512 = vmatmul.mubr.bf16.gmra.mrb[0].mxu0 %v1623
    %v2513 = vpop.f32.mrb[0].mxu0
    %v2514 = vadd.f32 %v2409, %v2513
    %v2515 = vpop.f32.mrb[0].mxu0
    %v2516 = vadd.f32 %v2413, %v2515
    %v2517 = vpop.f32.mrb[0].mxu0
    %v2518 = vpop.f32.mrb[0].mxu0
    %2519 = vdwg.mxu0
    %2520 = vmatprep.subr.bf16.mxu0 %v2146
    %2521 = vmatpush1.bf16.msra.mxu0 %v2145
    %2522 = vmatprep.subr.bf16.mxu0 %v2154
    %2523 = vmatpush1.bf16.msra.mxu0 %v2153
    %2524 = vmatprep.subr.bf16.mxu0 %v2162
    %2525 = vmatpush1.bf16.msra.mxu0 %v2161
    %2526 = vmatprep.subr.bf16.mxu0 %v2170
    %2527 = vmatpush1.bf16.msra.mxu0 %v2169
    %2528 = vmatprep.subr.bf16.mxu0 %v2178
    %2529 = vmatpush1.bf16.msra.mxu0 %v2177
    %2530 = vmatprep.subr.bf16.mxu0 %v2186
    %2531 = vmatpush1.bf16.msra.mxu0 %v2185
    %2532 = vmatprep.subr.bf16.mxu0 %v2194
    %2533 = vmatpush1.bf16.msra.mxu0 %v2193
    %2534 = vmatprep.subr.bf16.mxu0 %v2202
    %2535 = vmatpush1.bf16.msra.mxu0 %v2201
    %2536 = vmatprep.subr.bf16.mxu0 %v2210
    %2537 = vmatpush1.bf16.msra.mxu0 %v2209
    %2538 = vmatprep.subr.bf16.mxu0 %v2218
    %2539 = vmatpush1.bf16.msra.mxu0 %v2217
    %2540 = vmatprep.subr.bf16.mxu0 %v2226
    %2541 = vmatpush1.bf16.msra.mxu0 %v2225
    %2542 = vmatprep.subr.bf16.mxu0 %v2234
    %2543 = vmatpush1.bf16.msra.mxu0 %v2233
    %2544 = vmatprep.subr.bf16.mxu0 %v2242
    %2545 = vmatpush1.bf16.msra.mxu0 %v2241
    %2546 = vmatprep.subr.bf16.mxu0 %v2250
    %2547 = vmatpush1.bf16.msra.mxu0 %v2249
    %2548 = vmatprep.subr.bf16.mxu0 %v2258
    %2549 = vmatpush1.bf16.msra.mxu0 %v2257
    %2550 = vmatprep.subr.bf16.mxu0 %v2266
    %2551 = vmatpush1.bf16.msra.mxu0 %v2265
    %2552 = vmatprep.mubr.bf16.mxu0 %v1624
    %2553 = vmatmul.mubr.bf16.gmra.mrb[0].mxu0 %v1623
    %v2554 = vpop.f32.mrb[0].mxu0
    %v2555 = vadd.f32 %v2417, %v2554
    %v2556 = vpop.f32.mrb[0].mxu0
    %v2557 = vadd.f32 %v2421, %v2556
    %v2558 = vpop.f32.mrb[0].mxu0
    %v2559 = vpop.f32.mrb[0].mxu0
    %2560 = vdwg.mxu0
    %2561 = vmatprep.subr.bf16.mxu0 %v2148
    %2562 = vmatpush1.bf16.msra.mxu0 %v2147
    %2563 = vmatprep.subr.bf16.mxu0 %v2156
    %2564 = vmatpush1.bf16.msra.mxu0 %v2155
    %2565 = vmatprep.subr.bf16.mxu0 %v2164
    %2566 = vmatpush1.bf16.msra.mxu0 %v2163
    %2567 = vmatprep.subr.bf16.mxu0 %v2172
    %2568 = vmatpush1.bf16.msra.mxu0 %v2171
    %2569 = vmatprep.subr.bf16.mxu0 %v2180
    %2570 = vmatpush1.bf16.msra.mxu0 %v2179
    %2571 = vmatprep.subr.bf16.mxu0 %v2188
    %2572 = vmatpush1.bf16.msra.mxu0 %v2187
    %2573 = vmatprep.subr.bf16.mxu0 %v2196
    %2574 = vmatpush1.bf16.msra.mxu0 %v2195
    %2575 = vmatprep.subr.bf16.mxu0 %v2204
    %2576 = vmatpush1.bf16.msra.mxu0 %v2203
    %2577 = vmatprep.subr.bf16.mxu0 %v2212
    %2578 = vmatpush1.bf16.msra.mxu0 %v2211
    %2579 = vmatprep.subr.bf16.mxu0 %v2220
    %2580 = vmatpush1.bf16.msra.mxu0 %v2219
    %2581 = vmatprep.subr.bf16.mxu0 %v2228
    %2582 = vmatpush1.bf16.msra.mxu0 %v2227
    %2583 = vmatprep.subr.bf16.mxu0 %v2236
    %2584 = vmatpush1.bf16.msra.mxu0 %v2235
    %2585 = vmatprep.subr.bf16.mxu0 %v2244
    %2586 = vmatpush1.bf16.msra.mxu0 %v2243
    %2587 = vmatprep.subr.bf16.mxu0 %v2252
    %2588 = vmatpush1.bf16.msra.mxu0 %v2251
    %2589 = vmatprep.subr.bf16.mxu0 %v2260
    %2590 = vmatpush1.bf16.msra.mxu0 %v2259
    %2591 = vmatprep.subr.bf16.mxu0 %v2268
    %2592 = vmatpush1.bf16.msra.mxu0 %v2267
    %2593 = vmatprep.mubr.bf16.mxu0 %v1624
    %2594 = vmatmul.mubr.bf16.gmra.mrb[0].mxu0 %v1623
    %v2595 = vpop.f32.mrb[0].mxu0
    %v2596 = vadd.f32 %v2425, %v2595
    %v2597 = vpop.f32.mrb[0].mxu0
    %v2598 = vadd.f32 %v2429, %v2597
    %v2599 = vpop.f32.mrb[0].mxu0
    %v2600 = vpop.f32.mrb[0].mxu0
    %2601 = vdwg.mxu0
    %v2602 = vsub.f32 0.0, %v2473
    %v2603 = vsub.f32 0.0, %v2475
    %v2604 = vsub.f32 0.0, %v2514
    %v2605 = vsub.f32 0.0, %v2516
    %v2606 = vsub.f32 0.0, %v2555
    %v2607 = vsub.f32 0.0, %v2557
    %v2608 = vsub.f32 0.0, %v2596
    %v2609 = vsub.f32 0.0, %v2598
    %v2610 = vmul.f32 %v2602, 1.442695
    %v2611 = vpow.pop %v2610
    %v2612 = vmul.f32 %v2603, 1.442695
    %v2613 = vpow.pop %v2612
    %v2614 = vmul.f32 %v2604, 1.442695
    %v2615 = vpow.pop %v2614
    %v2616 = vmul.f32 %v2605, 1.442695
    %v2617 = vpow.pop %v2616
    %v2618 = vmul.f32 %v2606, 1.442695
    %v2619 = vpow.pop %v2618
    %v2620 = vmul.f32 %v2607, 1.442695
    %v2621 = vpow.pop %v2620
    %v2622 = vmul.f32 %v2608, 1.442695
    %v2623 = vpow.pop %v2622
    %v2624 = vmul.f32 %v2609, 1.442695
    %v2625 = vpow.pop %v2624
    %v2626 = vadd.f32 %v2611, 1.0
    %v2627 = vadd.f32 %v2613, 1.0
    %v2628 = vadd.f32 %v2615, 1.0
    %v2629 = vadd.f32 %v2617, 1.0
    %v2630 = vadd.f32 %v2619, 1.0
    %v2631 = vadd.f32 %v2621, 1.0
    %v2632 = vadd.f32 %v2623, 1.0
    %v2633 = vadd.f32 %v2625, 1.0
    %v2634 = vrcp.pop %v2626
    %v2635 = vrcp.pop %v2627
    %v2636 = vrcp.pop %v2628
    %v2637 = vrcp.pop %v2629
    %v2638 = vrcp.pop %v2630
    %v2639 = vrcp.pop %v2631
    %v2640 = vrcp.pop %v2632
    %v2641 = vrcp.pop %v2633
    %v2650 = vcombine.low %v2634, %v2635
    %v2651 = vcombine.low %v2636, %v2637
    %v2652 = vcombine.low %v2638, %v2639
    %v2653 = vcombine.low %v2640, %v2641
    %v2655 = vunpack.c.l.s4 1966171168
    %v2656 = vunpack.c.0.s8 %v2655
    %v2657 = vlaneseq
    %v2658 = vshrl.u32 %v2657, 7
    %v2659 = vsub.s32 %v2656, %v2658
    %v2660 = vrot.slane %v2650, %v2659
    %v2662 = vunpack.c.l.s4 1966171168
    %v2663 = vunpack.c.0.s8 %v2662
    %v2664 = vlaneseq
    %v2665 = vshrl.u32 %v2664, 7
    %v2666 = vsub.s32 %v2663, %v2665
    %v2667 = vrot.slane %v2651, %v2666
    %v2669 = vunpack.c.l.s4 1966171168
    %v2670 = vunpack.c.0.s8 %v2669
    %v2671 = vlaneseq
    %v2672 = vshrl.u32 %v2671, 7
    %v2673 = vsub.s32 %v2670, %v2672
    %v2674 = vrot.slane %v2652, %v2673
    %v2676 = vunpack.c.l.s4 1966171168
    %v2677 = vunpack.c.0.s8 %v2676
    %v2678 = vlaneseq
    %v2679 = vshrl.u32 %v2678, 7
    %v2680 = vsub.s32 %v2677, %v2679
    %v2681 = vrot.slane %v2653, %v2680
    %v2682 = vcombine.low %v2660, %v2667
    %v2683 = vcombine.low %v2674, %v2681
    %v2685 = vunpack.c.l.s4 1966171168
    %v2686 = vunpack.c.0.s8 %v2685
    %v2687 = vlaneseq
    %v2688 = vshrl.u32 %v2687, 7
    %v2689 = vsub.s32 %v2686, %v2688
    %v2690 = vrot.slane %v2682, %v2689
    %v2692 = vunpack.c.l.s4 1966171168
    %v2693 = vunpack.c.0.s8 %v2692
    %v2694 = vlaneseq
    %v2695 = vshrl.u32 %v2694, 7
    %v2696 = vsub.s32 %v2693, %v2695
    %v2697 = vrot.slane %v2683, %v2696
    %v2698 = vcombine.low %v2690, %v2697
    %2700 = vst [vmem:[#allocation10] sm:$0xff] %v2698
    // Predicated region
    $region54: #{tpu_custom_call.1} parent=1 // pred_check
      _
    $region55: #{tpu_custom_call.1} parent=1 // pred_check_branch
      %2702 = sbr.rel (0) target = $region57
    $region56: #{tpu_custom_call.1} parent=1 // pred_region
      %s2704 = ssub.s32 128, 128
      %2705 = vsyncadd [#allocation4], %s2704
      %s2707 = sshll.u32 [#allocation10], 4
      %s2708 = int_to_ptr.vmem [resolvable:$true] %s2707
      %2710 = dma.vmem_to_hbm [thread:$0]  %s2708, 128, %s9, [#allocation4]
    $region57: #{tpu_custom_call.1} parent=1 // pred_fallthru
      _
    // Predicated region
    $region58: #{tpu_custom_call.1} parent=1 // pred_check
      _
    $region59: #{tpu_custom_call.1} parent=1 // pred_check_branch
      %2712 = sbr.rel (0) target = $region61
    $region60: #{tpu_custom_call.1} parent=1 // pred_region
      %s2714 = ssub.s32 16, 16
      %2715 = vsyncadd [#allocation12], %s2714
      %s2717 = sshll.u32 [#allocation11], 4
      %s2718 = int_to_ptr.vmem [resolvable:$true] %s2717
      %2720 = dma.vmem_to_hbm [thread:$0]  %s2718, 16, %s10, [#allocation12]
    $region61: #{tpu_custom_call.1} parent=1 // pred_fallthru
      _
    // Predicated region
    $region62: #{tpu_custom_call.1} parent=1 // pred_check
      _
    $region63: #{tpu_custom_call.1} parent=1 // pred_check_branch
      %2722 = sbr.rel (0) target = $region65
    $region64: #{tpu_custom_call.1} parent=1 // pred_region
      %s2724 = ssub.s32 16, 16
      %2725 = vsyncadd [#allocation12], %s2724
      %s2727 = sshll.u32 [#allocation13], 4
      %s2728 = int_to_ptr.vmem [resolvable:$true] %s2727
      %2730 = dma.vmem_to_hbm [thread:$0]  %s2728, 16, %s11, [#allocation12]
    $region65: #{tpu_custom_call.1} parent=1 // pred_fallthru
      _
    // Predicated region
    $region66: #{tpu_custom_call.1} parent=1 // pred_check
      _
    $region67: #{tpu_custom_call.1} parent=1 // pred_check_branch
      %2732 = sbr.rel (0) target = $region69
    $region68: #{tpu_custom_call.1} parent=1 // pred_region
      %2733 = dma.done [#allocation4], 128
    $region69: #{tpu_custom_call.1} parent=1 // pred_fallthru
      _
    // Predicated region
    $region70: #{tpu_custom_call.1} parent=1 // pred_check
      _
    $region71: #{tpu_custom_call.1} parent=1 // pred_check_branch
      %2735 = sbr.rel (0) target = $region73
    $region72: #{tpu_custom_call.1} parent=1 // pred_region
      %2736 = dma.done [#allocation12], 16
    $region73: #{tpu_custom_call.1} parent=1 // pred_fallthru
      _
    // Predicated region
    $region74: #{tpu_custom_call.1} parent=1 // pred_check
      _
    $region75: #{tpu_custom_call.1} parent=1 // pred_check_branch
      %2738 = sbr.rel (0) target = $region77
    $region76: #{tpu_custom_call.1} parent=1 // pred_region
      %2739 = dma.done [#allocation12], 16
    $region77: #{tpu_custom_call.1} parent=1 // pred_fallthru
      _
    %2740 = vsyncpa [#allocation3], 1
    %2741 = vsyncpa [#allocation6], 1
    %2742 = vsyncpa [#allocation9], 1
    %2743 = vsyncpa [#allocation4], 1
    %2744 = vsyncpa [#allocation12], 1

</llo_original>
